<compile_context>
chip_gen: v6e
topology: v6e:2x2x1
jax: 0.10.0
libtpu: 0.0.40
codegen_flags: <defaults>
</compile_context>

<pallas_src>
import functools
import math

import jax
import jax.numpy as jnp
from jax.experimental import pallas as pl
from jax.experimental.pallas import tpu as pltpu


# ------------------------------ fused kernel --------------------------------

def _block_kernel(x_ref, w1_ref, sh1_ref, w2_ref, sh2_ref, w3_ref, sh3_ref,
                  o_ref, hpad_ref, *, H, W):
    """One bottleneck block for one image, fully VMEM-resident.

    x_ref   : (1, C, H*W)  f32   input image (NCHW flattened over spatial)
    w1_ref  : (C, P)       bf16  conv1 (1x1) with BN folded in
    w2_ref  : (9*P, P)     bf16  conv2 (3x3) im2col weights, rows = (kh, kw, cin)
    w3_ref  : (P, C)       bf16  conv3 (1x1) with BN folded in
    sh*_ref : (1, Nout)    f32   folded BN shifts
    o_ref   : (1, C, H*W)  f32   output
    hpad_ref: (H+2, W+2, P) f32  VMEM scratch for the zero-padded conv2 input
    """
    HW = H * W
    P = w1_ref.shape[1]

    x_chw = x_ref[0]                                   # (C, HW) f32
    x_hwc = jnp.transpose(x_chw)                       # (HW, C) f32 (also residual)

    # ---- conv1 (1x1) + bn1 + Hardtanh(0, 20) ----
    h1 = jnp.dot(x_hwc.astype(jnp.bfloat16), w1_ref[...],
                 preferred_element_type=jnp.float32)
    h1 = jnp.clip(h1 + sh1_ref[...], 0.0, 20.0)        # (HW, P)

    # ---- conv2 (3x3, stride 1, pad 1) + bn2 + Hardtanh(0, 20) ----
    # zero-padded halo of h1 built directly in VMEM (no wrapper jnp.pad)
    hpad_ref[...] = jnp.zeros_like(hpad_ref)
    hpad_ref[1:H + 1, 1:W + 1, :] = h1.reshape(H, W, P)
    # im2col: 9 shifted windows -> one (HW, 9P) slab -> a single K=9P MXU matmul
    taps = [hpad_ref[kh:kh + H, kw:kw + W, :].reshape(HW, P)
            for kh in range(3) for kw in range(3)]
    patch = jnp.concatenate(taps, axis=-1)             # (HW, 9P) f32
    h2 = jnp.dot(patch.astype(jnp.bfloat16), w2_ref[...],
                 preferred_element_type=jnp.float32)
    h2 = jnp.clip(h2 + sh2_ref[...], 0.0, 20.0)        # (HW, P)

    # ---- conv3 (1x1) + bn3 + residual + Hardtanh(0, 20) ----
    out = jnp.dot(h2.astype(jnp.bfloat16), w3_ref[...],
                  preferred_element_type=jnp.float32)
    out = jnp.clip(out + sh3_ref[...] + x_hwc, 0.0, 20.0)   # (HW, C)
    o_ref[0] = jnp.transpose(out)                      # back to (C, HW)


# -------------------------------- wrapper ------------------------------------

def basic_block50_forward(x_nchw, params):
    # TODO(synk): stride>1 / downsample branch not implemented -- the reference
    # module leaves `downsample` undefined (None), so only the identity-residual
    # configuration (stride=1, inplanes == planes*expansion) is runnable anyway.
    B, C, H, W = x_nchw.shape
    P = params["w1"].shape[1]
    HW = H * W
    kernel = functools.partial(_block_kernel, H=H, W=W)

    out = pl.pallas_call(
        kernel,
        out_shape=jax.ShapeDtypeStruct((B, C, HW), jnp.float32),
        grid=(B,),
        in_specs=[
            pl.BlockSpec((1, C, HW), lambda b: (b, 0, 0)),    # x (one image)
            pl.BlockSpec((C, P), lambda b: (0, 0)),           # w1
            pl.BlockSpec((1, P), lambda b: (0, 0)),           # shift1
            pl.BlockSpec((9 * P, P), lambda b: (0, 0)),       # w2 (im2col)
            pl.BlockSpec((1, P), lambda b: (0, 0)),           # shift2
            pl.BlockSpec((P, C), lambda b: (0, 0)),           # w3
            pl.BlockSpec((1, C), lambda b: (0, 0)),           # shift3
        ],
        out_specs=pl.BlockSpec((1, C, HW), lambda b: (b, 0, 0)),
        scratch_shapes=[pltpu.VMEM((H + 2, W + 2, P), jnp.float32)],
        compiler_params=pltpu.CompilerParams(dimension_semantics=("parallel",)),
    )(
        x_nchw.reshape(B, C, HW),            # free (metadata-only) reshape
        params["w1"], params["shift1"],
        params["w2"], params["shift2"],
        params["w3"], params["shift3"],
    )
    return out.reshape(B, C, H, W)


# ------------------------------ parameters -----------------------------------

def _fold_bn(key, w_hwio, eps=1e-5):
    """Inference-mode BatchNorm folded into conv weights: returns (w', shift)."""
    cout = w_hwio.shape[-1]
    kg, kb, km, kv = jax.random.split(key, 4)
    gamma = 1.0 + 0.1 * jax.random.normal(kg, (cout,), jnp.float32)
    beta = 0.1 * jax.random.normal(kb, (cout,), jnp.float32)
    mean = 0.1 * jax.random.normal(km, (cout,), jnp.float32)
    var = jax.random.uniform(kv, (cout,), jnp.float32, minval=0.5, maxval=1.5)
    scale = gamma / jnp.sqrt(var + eps)
    shift = beta - mean * scale
    return w_hwio * scale, shift.reshape(1, cout)


def init_block_params(key, inplanes, planes, expansion=4):
    k1, k2, k3, kb1, kb2, kb3 = jax.random.split(key, 6)

    def he(k, shape, fan_in):
        return jax.random.normal(k, shape, jnp.float32) * math.sqrt(2.0 / fan_in)

    w1 = he(k1, (1, 1, inplanes, planes), inplanes)            # conv1x1 (no bias)
    w2 = he(k2, (3, 3, planes, planes), 9 * planes)            # conv3x3 (no bias)
    w3 = he(k3, (1, 1, planes, planes * expansion), planes)    # conv1x1 (no bias)
    w1, sh1 = _fold_bn(kb1, w1)
    w2, sh2 = _fold_bn(kb2, w2)
    w3, sh3 = _fold_bn(kb3, w3)
    return {
        # conv1: (C, P); conv2: im2col (9*P, P) with rows ordered (kh, kw, cin);
        # conv3: (P, C). All weights bf16 (MXU), shifts f32.
        "w1": w1.reshape(inplanes, planes).astype(jnp.bfloat16), "shift1": sh1,
        "w2": w2.reshape(9 * planes, planes).astype(jnp.bfloat16), "shift2": sh2,
        "w3": w3.reshape(planes, planes * expansion).astype(jnp.bfloat16), "shift3": sh3,
    }


# --------------------------------- main ---------------------------------------

if __name__ == "__main__":
    key = jax.random.PRNGKey(0)
    kx, kp = jax.random.split(key)
    B, planes, expansion, H, W = 2, 32, 4, 16, 16
    inplanes = planes * expansion                              # identity residual
    x = jax.random.normal(kx, (B, inplanes, H, W), jnp.float32)
    params = init_block_params(kp, inplanes, planes, expansion)
    fwd = jax.jit(basic_block50_forward)
    out = fwd(x, params)
    jax.block_until_ready(out)
    assert out.shape == (B, inplanes, H, W)
    print("KERNEL_OK")
</pallas_src>

<mosaic_0001>
module attributes {stable_mosaic.version = 11 : i64} {
  func.func @_block_kernel(%arg0: i32, %arg1: memref<1x128x256xf32, #tpu.memory_space<vmem>>, %arg2: memref<128x32xbf16, #tpu.memory_space<vmem>>, %arg3: memref<1x32xf32, #tpu.memory_space<vmem>>, %arg4: memref<288x32xbf16, #tpu.memory_space<vmem>>, %arg5: memref<1x32xf32, #tpu.memory_space<vmem>>, %arg6: memref<32x128xbf16, #tpu.memory_space<vmem>>, %arg7: memref<1x128xf32, #tpu.memory_space<vmem>>, %arg8: memref<1x128x256xf32, #tpu.memory_space<vmem>>, %arg9: memref<18x18x32xf32, #tpu.memory_space<vmem>>) attributes {dimension_semantics = [#tpu.dimension_semantics<parallel>], iteration_bounds = array<i64: 2>, scalar_prefetch = 0 : i64, scratch_operands = 1 : i64, tpu.core_type = #tpu.core_type<tc>, window_params = [{transform_indices = @transform_0, window_bounds = array<i64: 1, 128, 256>}, {pipeline_mode = #tpu.pipeline_mode<synchronous>, transform_indices = @transform_1, window_bounds = array<i64: 128, 32>}, {pipeline_mode = #tpu.pipeline_mode<synchronous>, transform_indices = @transform_2, window_bounds = array<i64: 1, 32>}, {pipeline_mode = #tpu.pipeline_mode<synchronous>, transform_indices = @transform_3, window_bounds = array<i64: 288, 32>}, {pipeline_mode = #tpu.pipeline_mode<synchronous>, transform_indices = @transform_4, window_bounds = array<i64: 1, 32>}, {pipeline_mode = #tpu.pipeline_mode<synchronous>, transform_indices = @transform_5, window_bounds = array<i64: 32, 128>}, {pipeline_mode = #tpu.pipeline_mode<synchronous>, transform_indices = @transform_6, window_bounds = array<i64: 1, 128>}, {transform_indices = @transform_7, window_bounds = array<i64: 1, 128, 256>}]} {
    %c0 = arith.constant 0 : index
    %c0_0 = arith.constant 0 : index
    %c0_1 = arith.constant 0 : index
    %0 = vector.load %arg1[%c0, %c0_0, %c0_1] : memref<1x128x256xf32, #tpu.memory_space<vmem>>, vector<1x128x256xf32>
    %1 = vector.shape_cast %0 : vector<1x128x256xf32> to vector<128x256xf32>
    %2 = tpu.transpose %1, [1, 0] : vector<128x256xf32> -> vector<256x128xf32>
    %3 = arith.truncf %2 : vector<256x128xf32> to vector<256x128xbf16>
    %c0_2 = arith.constant 0 : index
    %c0_3 = arith.constant 0 : index
    %4 = vector.load %arg2[%c0_2, %c0_3] : memref<128x32xbf16, #tpu.memory_space<vmem>>, vector<128x32xbf16>
    %cst = arith.constant dense<0.000000e+00> : vector<256x32xf32>
    %5 = tpu.matmul %3, %4, %cst {dimension_numbers = #tpu.dot_dimension_numbers<[1], [0], [0], [1], [0, 0, 1, 1], [], []>} : vector<256x128xbf16>, vector<128x32xbf16>, vector<256x32xf32> -> vector<256x32xf32>
    %c0_4 = arith.constant 0 : index
    %c0_5 = arith.constant 0 : index
    %6 = vector.load %arg3[%c0_4, %c0_5] : memref<1x32xf32, #tpu.memory_space<vmem>>, vector<1x32xf32>
    %7 = vector.broadcast %6 : vector<1x32xf32> to vector<256x32xf32>
    %8 = arith.addf %5, %7 : vector<256x32xf32>
    %cst_6 = arith.constant 0.000000e+00 : f32
    %cst_7 = arith.constant 2.000000e+01 : f32
    %9 = vector.broadcast %cst_6 : f32 to vector<256x32xf32>
    %10 = arith.maximumf %9, %8 : vector<256x32xf32>
    %11 = vector.broadcast %cst_7 : f32 to vector<256x32xf32>
    %12 = arith.minimumf %11, %10 : vector<256x32xf32>
    %cst_8 = arith.constant 0.000000e+00 : f32
    %13 = vector.broadcast %cst_8 : f32 to vector<18x18x32xf32>
    %c0_9 = arith.constant 0 : index
    %c0_10 = arith.constant 0 : index
    %c0_11 = arith.constant 0 : index
    %14 = vector.load %arg9[%c0_9, %c0_10, %c0_11] : memref<18x18x32xf32, #tpu.memory_space<vmem>>, vector<18x18x32xf32>
    tpu.vector_store %arg9[%c0_9, %c0_10, %c0_11], %13 {strides = array<i32>} : memref<18x18x32xf32, #tpu.memory_space<vmem>>, vector<18x18x32xf32>,
    %15 = vector.shape_cast %12 : vector<256x32xf32> to vector<16x16x32xf32>
    %c1 = arith.constant 1 : index
    %c1_12 = arith.constant 1 : index
    %c0_13 = arith.constant 0 : index
    %16 = vector.load %arg9[%c1, %c1_12, %c0_13] : memref<18x18x32xf32, #tpu.memory_space<vmem>>, vector<16x16x32xf32>
    tpu.vector_store %arg9[%c1, %c1_12, %c0_13], %15 {strides = array<i32>} : memref<18x18x32xf32, #tpu.memory_space<vmem>>, vector<16x16x32xf32>,
    %c0_14 = arith.constant 0 : index
    %c0_15 = arith.constant 0 : index
    %c0_16 = arith.constant 0 : index
    %17 = vector.load %arg9[%c0_14, %c0_15, %c0_16] : memref<18x18x32xf32, #tpu.memory_space<vmem>>, vector<16x16x32xf32>
    %18 = vector.shape_cast %17 : vector<16x16x32xf32> to vector<256x32xf32>
    %c0_17 = arith.constant 0 : index
    %c1_18 = arith.constant 1 : index
    %c0_19 = arith.constant 0 : index
    %19 = vector.load %arg9[%c0_17, %c1_18, %c0_19] : memref<18x18x32xf32, #tpu.memory_space<vmem>>, vector<16x16x32xf32>
    %20 = vector.shape_cast %19 : vector<16x16x32xf32> to vector<256x32xf32>
    %c0_20 = arith.constant 0 : index
    %c2 = arith.constant 2 : index
    %c0_21 = arith.constant 0 : index
    %21 = vector.load %arg9[%c0_20, %c2, %c0_21] : memref<18x18x32xf32, #tpu.memory_space<vmem>>, vector<16x16x32xf32>
    %22 = vector.shape_cast %21 : vector<16x16x32xf32> to vector<256x32xf32>
    %c1_22 = arith.constant 1 : index
    %c0_23 = arith.constant 0 : index
    %c0_24 = arith.constant 0 : index
    %23 = vector.load %arg9[%c1_22, %c0_23, %c0_24] : memref<18x18x32xf32, #tpu.memory_space<vmem>>, vector<16x16x32xf32>
    %24 = vector.shape_cast %23 : vector<16x16x32xf32> to vector<256x32xf32>
    %c1_25 = arith.constant 1 : index
    %c1_26 = arith.constant 1 : index
    %c0_27 = arith.constant 0 : index
    %25 = vector.load %arg9[%c1_25, %c1_26, %c0_27] : memref<18x18x32xf32, #tpu.memory_space<vmem>>, vector<16x16x32xf32>
    %26 = vector.shape_cast %25 : vector<16x16x32xf32> to vector<256x32xf32>
    %c1_28 = arith.constant 1 : index
    %c2_29 = arith.constant 2 : index
    %c0_30 = arith.constant 0 : index
    %27 = vector.load %arg9[%c1_28, %c2_29, %c0_30] : memref<18x18x32xf32, #tpu.memory_space<vmem>>, vector<16x16x32xf32>
    %28 = vector.shape_cast %27 : vector<16x16x32xf32> to vector<256x32xf32>
    %c2_31 = arith.constant 2 : index
    %c0_32 = arith.constant 0 : index
    %c0_33 = arith.constant 0 : index
    %29 = vector.load %arg9[%c2_31, %c0_32, %c0_33] : memref<18x18x32xf32, #tpu.memory_space<vmem>>, vector<16x16x32xf32>
    %30 = vector.shape_cast %29 : vector<16x16x32xf32> to vector<256x32xf32>
    %c2_34 = arith.constant 2 : index
    %c1_35 = arith.constant 1 : index
    %c0_36 = arith.constant 0 : index
    %31 = vector.load %arg9[%c2_34, %c1_35, %c0_36] : memref<18x18x32xf32, #tpu.memory_space<vmem>>, vector<16x16x32xf32>
    %32 = vector.shape_cast %31 : vector<16x16x32xf32> to vector<256x32xf32>
    %c2_37 = arith.constant 2 : index
    %c2_38 = arith.constant 2 : index
    %c0_39 = arith.constant 0 : index
    %33 = vector.load %arg9[%c2_37, %c2_38, %c0_39] : memref<18x18x32xf32, #tpu.memory_space<vmem>>, vector<16x16x32xf32>
    %34 = vector.shape_cast %33 : vector<16x16x32xf32> to vector<256x32xf32>
    %35 = tpu.concatenate %18, %20, %22, %24, %26, %28, %30, %32, %34 in 1 : vector<256x32xf32>, vector<256x32xf32>, vector<256x32xf32>, vector<256x32xf32>, vector<256x32xf32>, vector<256x32xf32>, vector<256x32xf32>, vector<256x32xf32>, vector<256x32xf32> -> vector<256x288xf32>
    %36 = arith.truncf %35 : vector<256x288xf32> to vector<256x288xbf16>
    %c0_40 = arith.constant 0 : index
    %c0_41 = arith.constant 0 : index
    %37 = vector.load %arg4[%c0_40, %c0_41] : memref<288x32xbf16, #tpu.memory_space<vmem>>, vector<288x32xbf16>
    %cst_42 = arith.constant dense<0.000000e+00> : vector<256x32xf32>
    %38 = tpu.matmul %36, %37, %cst_42 {dimension_numbers = #tpu.dot_dimension_numbers<[1], [0], [0], [1], [0, 0, 1, 1], [], []>} : vector<256x288xbf16>, vector<288x32xbf16>, vector<256x32xf32> -> vector<256x32xf32>
    %c0_43 = arith.constant 0 : index
    %c0_44 = arith.constant 0 : index
    %39 = vector.load %arg5[%c0_43, %c0_44] : memref<1x32xf32, #tpu.memory_space<vmem>>, vector<1x32xf32>
    %40 = vector.broadcast %39 : vector<1x32xf32> to vector<256x32xf32>
    %41 = arith.addf %38, %40 : vector<256x32xf32>
    %cst_45 = arith.constant 0.000000e+00 : f32
    %cst_46 = arith.constant 2.000000e+01 : f32
    %42 = vector.broadcast %cst_45 : f32 to vector<256x32xf32>
    %43 = arith.maximumf %42, %41 : vector<256x32xf32>
    %44 = vector.broadcast %cst_46 : f32 to vector<256x32xf32>
    %45 = arith.minimumf %44, %43 : vector<256x32xf32>
    %46 = arith.truncf %45 : vector<256x32xf32> to vector<256x32xbf16>
    %c0_47 = arith.constant 0 : index
    %c0_48 = arith.constant 0 : index
    %47 = vector.load %arg6[%c0_47, %c0_48] : memref<32x128xbf16, #tpu.memory_space<vmem>>, vector<32x128xbf16>
    %cst_49 = arith.constant dense<0.000000e+00> : vector<256x128xf32>
    %48 = tpu.matmul %46, %47, %cst_49 {dimension_numbers = #tpu.dot_dimension_numbers<[1], [0], [0], [1], [0, 0, 1, 1], [], []>} : vector<256x32xbf16>, vector<32x128xbf16>, vector<256x128xf32> -> vector<256x128xf32>
    %c0_50 = arith.constant 0 : index
    %c0_51 = arith.constant 0 : index
    %49 = vector.load %arg7[%c0_50, %c0_51] : memref<1x128xf32, #tpu.memory_space<vmem>>, vector<1x128xf32>
    %50 = vector.broadcast %49 : vector<1x128xf32> to vector<256x128xf32>
    %51 = arith.addf %48, %50 : vector<256x128xf32>
    %52 = arith.addf %51, %2 : vector<256x128xf32>
    %cst_52 = arith.constant 0.000000e+00 : f32
    %cst_53 = arith.constant 2.000000e+01 : f32
    %53 = vector.broadcast %cst_52 : f32 to vector<256x128xf32>
    %54 = arith.maximumf %53, %52 : vector<256x128xf32>
    %55 = vector.broadcast %cst_53 : f32 to vector<256x128xf32>
    %56 = arith.minimumf %55, %54 : vector<256x128xf32>
    %57 = tpu.transpose %56, [1, 0] : vector<256x128xf32> -> vector<128x256xf32>
    %c0_54 = arith.constant 0 : index
    %c0_55 = arith.constant 0 : index
    %c0_56 = arith.constant 0 : index
    %58 = vector.load %arg8[%c0_54, %c0_55, %c0_56] : memref<1x128x256xf32, #tpu.memory_space<vmem>>, vector<1x128x256xf32>
    %59 = vector.shape_cast %58 : vector<1x128x256xf32> to vector<128x256xf32>
    %60 = vector.shape_cast %57 : vector<128x256xf32> to vector<1x128x256xf32>
    tpu.vector_store %arg8[%c0_54, %c0_55, %c0_56], %60 {strides = array<i32>} : memref<1x128x256xf32, #tpu.memory_space<vmem>>, vector<1x128x256xf32>,
    return
  }
  func.func @transform_0(%arg0: i32) -> (i32, i32, i32) {
    %c0_i32 = arith.constant 0 : i32
    %c0_i32_0 = arith.constant 0 : i32
    %c0_i32_1 = arith.constant 0 : i32
    return %arg0, %c0_i32, %c0_i32_0 : i32, i32, i32
  }
  func.func @transform_1(%arg0: i32) -> (i32, i32) {
    %c0_i32 = arith.constant 0 : i32
    %c0_i32_0 = arith.constant 0 : i32
    %c0_i32_1 = arith.constant 0 : i32
    return %c0_i32, %c0_i32_0 : i32, i32
  }
  func.func @transform_2(%arg0: i32) -> (i32, i32) {
    %c0_i32 = arith.constant 0 : i32
    %c0_i32_0 = arith.constant 0 : i32
    %c0_i32_1 = arith.constant 0 : i32
    return %c0_i32, %c0_i32_0 : i32, i32
  }
  func.func @transform_3(%arg0: i32) -> (i32, i32) {
    %c0_i32 = arith.constant 0 : i32
    %c0_i32_0 = arith.constant 0 : i32
    %c0_i32_1 = arith.constant 0 : i32
    return %c0_i32, %c0_i32_0 : i32, i32
  }
  func.func @transform_4(%arg0: i32) -> (i32, i32) {
    %c0_i32 = arith.constant 0 : i32
    %c0_i32_0 = arith.constant 0 : i32
    %c0_i32_1 = arith.constant 0 : i32
    return %c0_i32, %c0_i32_0 : i32, i32
  }
  func.func @transform_5(%arg0: i32) -> (i32, i32) {
    %c0_i32 = arith.constant 0 : i32
    %c0_i32_0 = arith.constant 0 : i32
    %c0_i32_1 = arith.constant 0 : i32
    return %c0_i32, %c0_i32_0 : i32, i32
  }
  func.func @transform_6(%arg0: i32) -> (i32, i32) {
    %c0_i32 = arith.constant 0 : i32
    %c0_i32_0 = arith.constant 0 : i32
    %c0_i32_1 = arith.constant 0 : i32
    return %c0_i32, %c0_i32_0 : i32, i32
  }
  func.func @transform_7(%arg0: i32) -> (i32, i32, i32) {
    %c0_i32 = arith.constant 0 : i32
    %c0_i32_0 = arith.constant 0 : i32
    %c0_i32_1 = arith.constant 0 : i32
    return %arg0, %c0_i32, %c0_i32_0 : i32, i32, i32
  }
}

</mosaic_0001>

<llo_original>
// kernel: basic_block50_forward.1
$region0: #{basic_block50_forward.1}
  #allocation0 [shape = 'u32[]', space=smem, size = 0x4, offset = 0x4, fixed_abs, tag = 'smem constant byte address 0x4 - core index']
  #allocation1 [shape = 'u32[144,128]{1,0:T(1,128)}', space=vmem, size = 0x12000, scoped, tag = 'internal scratch']
  #allocation2 [shape = 'f32[18,18,32]{2,1,0:T(8,128)}', space=vmem, size = 0x36000, scoped, tag = 'scratch operand']
  %s0 = inlined_call_operand.vmem [shape: f32[2,128,256], index: 0, kind: input, shape index: {}]
  %s1 = inlined_call_operand.vmem [shape: bf16[128,32], index: 1, kind: input, shape index: {}]
  %s2 = inlined_call_operand.vmem [shape: f32[1,32], index: 2, kind: input, shape index: {}]
  %s3 = inlined_call_operand.vmem [shape: bf16[288,32], index: 3, kind: input, shape index: {}]
  %s4 = inlined_call_operand.vmem [shape: f32[1,32], index: 4, kind: input, shape index: {}]
  %s5 = inlined_call_operand.vmem [shape: bf16[32,128], index: 5, kind: input, shape index: {}]
  %s6 = inlined_call_operand.vmem [shape: f32[1,128], index: 6, kind: input, shape index: {}]
  %s7 = inlined_call_operand.vmem [shape: f32[2,128,256], index: 7, kind: output, shape index: {}]
  %s8 = sld [smem:[#allocation0]]
  $region61: #{basic_block50_forward.1} parent=0
    _
  %s10 = ssub.s32 1, %s8
  %s11 = scalar_select 0, %s10, %s8
  loop: start=0, step=1, limit=4
  $region2: #{basic_block50_forward.1} parent=0 // loop_pre_header
    _
  $region3: #{basic_block50_forward.1} parent=0 // loop_header
    %s13 = sphi 0, %s17
    %p14 = scmp.ge.s32.totalorder %s13, 4
    %s23 = sphi 0, %s25
    %s26 = sphi 0, %s23
    %s27 = sphi 0, %s26
    %s43 = sphi 0, %s27
    %s47 = sphi 0, %s47
    %s49 = sphi 0, %s47
    %s50 = sphi 0, %s49
    %s64 = sphi 0, %s50
    %s68 = sphi 0, %s68
    %s70 = sphi 0, %s68
    %s71 = sphi 0, %s70
    %s85 = sphi 0, %s71
    %s89 = sphi 0, %s89
    %s91 = sphi 0, %s89
    %s92 = sphi 0, %s91
    %s106 = sphi 0, %s92
    %s110 = sphi 0, %s110
    %s112 = sphi 0, %s110
    %s113 = sphi 0, %s112
    %s127 = sphi 0, %s113
    %s131 = sphi 0, %s131
    %s133 = sphi 0, %s131
    %s134 = sphi 0, %s133
    %s148 = sphi 0, %s134
    %s152 = sphi 0, %s152
    %s154 = sphi 0, %s152
    %s155 = sphi 0, %s154
    %s169 = sphi 0, %s155
    %s175 = sphi 0, %s177
    %s178 = sphi 0, %s175
    %s179 = sphi 0, %s178
    %s195 = sphi 0, %s179
  $region4: #{basic_block50_forward.1} parent=0 // loop_header_branch
    %16 = sbr.rel (%p14) target = $region8
  $region5: #{basic_block50_forward.1} parent=0 // loop_body
    %s18 = ssub.s32 %s13, 1
    %s19 = ssub.s32 %s13, 2
    %s20 = sadd.s32 %s13, 1
    %s21 = ssub.s32 %s13, %s20
    %p22 = scmp.eq.s32.totalorder %s21, 0
    %s24 = sadd.s32 %s23, 1
    %s25 = scalar_select %p22, %s23, %s24
    %p28 = pneg %p22
    %p29 = scmp.eq.s32.totalorder %s13, 1
    %p30 = por %p28, %p29
    %p31 = scmp.ne.s32.totalorder %s23, %s26
    %p32 = scmp.eq.s32.totalorder %s13, 0
    %p33 = por %p31, %p32
    %p34 = scmp.ne.s32.totalorder %s23, %s26
    %p35 = scmp.eq.s32.totalorder %s18, 1
    %p36 = por %p34, %p35
    %p37 = scmp.ne.s32.totalorder %s26, %s27
    %p38 = scmp.eq.s32.totalorder %s18, 0
    %p39 = por %p37, %p38
    %p40 = scmp.ne.s32.totalorder %s26, %s27
    %p41 = scmp.eq.s32.totalorder %s19, 1
    %p42 = por %p40, %p41
    %p44 = scmp.ne.s32.totalorder %s27, %s43
    %p45 = scmp.eq.s32.totalorder %s19, 0
    %p46 = por %p44, %p45
    %s48 = sadd.s32 %s47, 1
    %p51 = scmp.eq.s32.totalorder %s13, 1
    %p52 = scmp.ne.s32.totalorder %s47, %s49
    %p53 = scmp.eq.s32.totalorder %s13, 0
    %p54 = por %p52, %p53
    %p55 = scmp.ne.s32.totalorder %s47, %s49
    %p56 = scmp.eq.s32.totalorder %s18, 1
    %p57 = por %p55, %p56
    %p58 = scmp.ne.s32.totalorder %s49, %s50
    %p59 = scmp.eq.s32.totalorder %s18, 0
    %p60 = por %p58, %p59
    %p61 = scmp.ne.s32.totalorder %s49, %s50
    %p62 = scmp.eq.s32.totalorder %s19, 1
    %p63 = por %p61, %p62
    %p65 = scmp.ne.s32.totalorder %s50, %s64
    %p66 = scmp.eq.s32.totalorder %s19, 0
    %p67 = por %p65, %p66
    %s69 = sadd.s32 %s68, 1
    %p72 = scmp.eq.s32.totalorder %s13, 1
    %p73 = scmp.ne.s32.totalorder %s68, %s70
    %p74 = scmp.eq.s32.totalorder %s13, 0
    %p75 = por %p73, %p74
    %p76 = scmp.ne.s32.totalorder %s68, %s70
    %p77 = scmp.eq.s32.totalorder %s18, 1
    %p78 = por %p76, %p77
    %p79 = scmp.ne.s32.totalorder %s70, %s71
    %p80 = scmp.eq.s32.totalorder %s18, 0
    %p81 = por %p79, %p80
    %p82 = scmp.ne.s32.totalorder %s70, %s71
    %p83 = scmp.eq.s32.totalorder %s19, 1
    %p84 = por %p82, %p83
    %p86 = scmp.ne.s32.totalorder %s71, %s85
    %p87 = scmp.eq.s32.totalorder %s19, 0
    %p88 = por %p86, %p87
    %s90 = sadd.s32 %s89, 1
    %p93 = scmp.eq.s32.totalorder %s13, 1
    %p94 = scmp.ne.s32.totalorder %s89, %s91
    %p95 = scmp.eq.s32.totalorder %s13, 0
    %p96 = por %p94, %p95
    %p97 = scmp.ne.s32.totalorder %s89, %s91
    %p98 = scmp.eq.s32.totalorder %s18, 1
    %p99 = por %p97, %p98
    %p100 = scmp.ne.s32.totalorder %s91, %s92
    %p101 = scmp.eq.s32.totalorder %s18, 0
    %p102 = por %p100, %p101
    %p103 = scmp.ne.s32.totalorder %s91, %s92
    %p104 = scmp.eq.s32.totalorder %s19, 1
    %p105 = por %p103, %p104
    %p107 = scmp.ne.s32.totalorder %s92, %s106
    %p108 = scmp.eq.s32.totalorder %s19, 0
    %p109 = por %p107, %p108
    %s111 = sadd.s32 %s110, 1
    %p114 = scmp.eq.s32.totalorder %s13, 1
    %p115 = scmp.ne.s32.totalorder %s110, %s112
    %p116 = scmp.eq.s32.totalorder %s13, 0
    %p117 = por %p115, %p116
    %p118 = scmp.ne.s32.totalorder %s110, %s112
    %p119 = scmp.eq.s32.totalorder %s18, 1
    %p120 = por %p118, %p119
    %p121 = scmp.ne.s32.totalorder %s112, %s113
    %p122 = scmp.eq.s32.totalorder %s18, 0
    %p123 = por %p121, %p122
    %p124 = scmp.ne.s32.totalorder %s112, %s113
    %p125 = scmp.eq.s32.totalorder %s19, 1
    %p126 = por %p124, %p125
    %p128 = scmp.ne.s32.totalorder %s113, %s127
    %p129 = scmp.eq.s32.totalorder %s19, 0
    %p130 = por %p128, %p129
    %s132 = sadd.s32 %s131, 1
    %p135 = scmp.eq.s32.totalorder %s13, 1
    %p136 = scmp.ne.s32.totalorder %s131, %s133
    %p137 = scmp.eq.s32.totalorder %s13, 0
    %p138 = por %p136, %p137
    %p139 = scmp.ne.s32.totalorder %s131, %s133
    %p140 = scmp.eq.s32.totalorder %s18, 1
    %p141 = por %p139, %p140
    %p142 = scmp.ne.s32.totalorder %s133, %s134
    %p143 = scmp.eq.s32.totalorder %s18, 0
    %p144 = por %p142, %p143
    %p145 = scmp.ne.s32.totalorder %s133, %s134
    %p146 = scmp.eq.s32.totalorder %s19, 1
    %p147 = por %p145, %p146
    %p149 = scmp.ne.s32.totalorder %s134, %s148
    %p150 = scmp.eq.s32.totalorder %s19, 0
    %p151 = por %p149, %p150
    %s153 = sadd.s32 %s152, 1
    %p156 = scmp.eq.s32.totalorder %s13, 1
    %p157 = scmp.ne.s32.totalorder %s152, %s154
    %p158 = scmp.eq.s32.totalorder %s13, 0
    %p159 = por %p157, %p158
    %p160 = scmp.ne.s32.totalorder %s152, %s154
    %p161 = scmp.eq.s32.totalorder %s18, 1
    %p162 = por %p160, %p161
    %p163 = scmp.ne.s32.totalorder %s154, %s155
    %p164 = scmp.eq.s32.totalorder %s18, 0
    %p165 = por %p163, %p164
    %p166 = scmp.ne.s32.totalorder %s154, %s155
    %p167 = scmp.eq.s32.totalorder %s19, 1
    %p168 = por %p166, %p167
    %p170 = scmp.ne.s32.totalorder %s155, %s169
    %p171 = scmp.eq.s32.totalorder %s19, 0
    %p172 = por %p170, %p171
    %s173 = ssub.s32 %s13, %s20
    %p174 = scmp.eq.s32.totalorder %s173, 0
    %s176 = sadd.s32 %s175, 1
    %s177 = scalar_select %p174, %s175, %s176
    %p180 = pneg %p174
    %p181 = scmp.eq.s32.totalorder %s13, 1
    %p182 = por %p180, %p181
    %p183 = scmp.ne.s32.totalorder %s175, %s178
    %p184 = scmp.eq.s32.totalorder %s13, 0
    %p185 = por %p183, %p184
    %p186 = scmp.ne.s32.totalorder %s175, %s178
    %p187 = scmp.eq.s32.totalorder %s18, 1
    %p188 = por %p186, %p187
    %p189 = scmp.ne.s32.totalorder %s178, %s179
    %p190 = scmp.eq.s32.totalorder %s18, 0
    %p191 = por %p189, %p190
    %p192 = scmp.ne.s32.totalorder %s178, %s179
    %p193 = scmp.eq.s32.totalorder %s19, 1
    %p194 = por %p192, %p193
    %p196 = scmp.ne.s32.totalorder %s179, %s195
    %p197 = scmp.eq.s32.totalorder %s19, 0
    %p198 = por %p196, %p197
    %p199 = scmp.le.s32.totalorder 1, %s13
    %p200 = scmp.lt.s32.totalorder %s13, 3
    %p201 = pnand %p199, %p200
    %p202 = pneg %p201
    // Predicated region
    $region9: #{basic_block50_forward.1} parent=5 // pred_check
      _
    $region10: #{basic_block50_forward.1} parent=5 // pred_check_branch
      %204 = sbr.rel (%p201) target = $region12
    $region11: #{basic_block50_forward.1} parent=5 // pred_region
      %s205 = ssub.s32 %s13, 1
      // Predicated region
      $region13: #{basic_block50_forward.1} parent=11 // pred_check
        %p206 = pneg %p60
      $region14: #{basic_block50_forward.1} parent=11 // pred_check_branch
        %208 = sbr.rel (%p206) target = $region16
      $region15: #{basic_block50_forward.1} parent=11 // pred_region
        _
      $region16: #{basic_block50_forward.1} parent=11 // pred_fallthru
        _
      // Predicated region
      $region17: #{basic_block50_forward.1} parent=11 // pred_check
        %p209 = pneg %p81
      $region18: #{basic_block50_forward.1} parent=11 // pred_check_branch
        %211 = sbr.rel (%p209) target = $region20
      $region19: #{basic_block50_forward.1} parent=11 // pred_region
        _
      $region20: #{basic_block50_forward.1} parent=11 // pred_fallthru
        _
      // Predicated region
      $region21: #{basic_block50_forward.1} parent=11 // pred_check
        %p212 = pneg %p102
      $region22: #{basic_block50_forward.1} parent=11 // pred_check_branch
        %214 = sbr.rel (%p212) target = $region24
      $region23: #{basic_block50_forward.1} parent=11 // pred_region
        _
      $region24: #{basic_block50_forward.1} parent=11 // pred_fallthru
        _
      // Predicated region
      $region25: #{basic_block50_forward.1} parent=11 // pred_check
        %p215 = pneg %p123
      $region26: #{basic_block50_forward.1} parent=11 // pred_check_branch
        %217 = sbr.rel (%p215) target = $region28
      $region27: #{basic_block50_forward.1} parent=11 // pred_region
        _
      $region28: #{basic_block50_forward.1} parent=11 // pred_fallthru
        _
      // Predicated region
      $region29: #{basic_block50_forward.1} parent=11 // pred_check
        %p218 = pneg %p144
      $region30: #{basic_block50_forward.1} parent=11 // pred_check_branch
        %220 = sbr.rel (%p218) target = $region32
      $region31: #{basic_block50_forward.1} parent=11 // pred_region
        _
      $region32: #{basic_block50_forward.1} parent=11 // pred_fallthru
        _
      // Predicated region
      $region33: #{basic_block50_forward.1} parent=11 // pred_check
        %p221 = pneg %p165
      $region34: #{basic_block50_forward.1} parent=11 // pred_check_branch
        %223 = sbr.rel (%p221) target = $region36
      $region35: #{basic_block50_forward.1} parent=11 // pred_region
        _
      $region36: #{basic_block50_forward.1} parent=11 // pred_fallthru
        _
    $region12: #{basic_block50_forward.1} parent=5 // pred_fallthru
      _
    %p224 = scmp.lt.s32.totalorder %s13, 2
    // Predicated region
    $region37: #{basic_block50_forward.1} parent=5 // pred_check
      %p225 = pneg %p224
    $region38: #{basic_block50_forward.1} parent=5 // pred_check_branch
      %227 = sbr.rel (%p225) target = $region40
    $region39: #{basic_block50_forward.1} parent=5 // pred_region
      // Predicated region
      $region41: #{basic_block50_forward.1} parent=39 // pred_check
        %p228 = pneg %p33
      $region42: #{basic_block50_forward.1} parent=39 // pred_check_branch
        %230 = sbr.rel (%p228) target = $region44
      $region43: #{basic_block50_forward.1} parent=39 // pred_region
        %p231 = scmp.lt.s32.totalorder %s13, 1
        %s232 = scalar_select %p231, %s13, 1
        %s233 = smul.addr %s232, 32
        %s234 = smul.addr %s233, 8
        %s235 = scalar_lea.vmem %s0, %s234
      $region44: #{basic_block50_forward.1} parent=39 // pred_fallthru
        _
    $region40: #{basic_block50_forward.1} parent=5 // pred_fallthru
      _
    %p236 = scmp.le.s32.totalorder 1, %s13
    %p237 = scmp.lt.s32.totalorder %s13, 3
    %p238 = pnand %p236, %p237
    %p239 = pneg %p238
    // Predicated region
    $region45: #{basic_block50_forward.1} parent=5 // pred_check
      _
    $region46: #{basic_block50_forward.1} parent=5 // pred_check_branch
      %241 = sbr.rel (%p238) target = $region48
    $region47: #{basic_block50_forward.1} parent=5 // pred_region
      %s242 = ssub.s32 %s13, 1
      %p243 = scmp.lt.s32.totalorder %s18, 1
      %s244 = scalar_select %p243, %s18, 1
      %s245 = smul.addr %s244, 32
      %s246 = smul.addr %s245, 8
      %s247 = scalar_lea.vmem %s0, %s246
      %p248 = pneg %p39
      %p249 = pneg %p36
      %p250 = pneg %p60
      %p251 = pneg %p57
      %p252 = pneg %p81
      %p253 = pneg %p78
      %p254 = pneg %p102
      %p255 = pneg %p99
      %p256 = pneg %p123
      %p257 = pneg %p120
      %p258 = pneg %p144
      %p259 = pneg %p141
      %p260 = pneg %p165
      %p261 = pneg %p162
      %p262 = pneg %p191
      %p263 = pneg %p188
      %p264 = scmp.lt.s32.totalorder %s18, 1
      %s265 = scalar_select %p264, %s18, 1
      %s266 = smul.addr %s265, 32
      %s267 = smul.addr %s266, 8
      %s268 = scalar_lea.vmem %s7, %s267
      %p269 = scmp.lt.s32.totalorder %s18, 1
      %s270 = scalar_select %p269, %s18, 1
      %s271 = smul.addr %s270, 32
      %s272 = smul.addr %s271, 8
      %s273 = scalar_lea.vmem %s0, %s272
      %p274 = scmp.lt.s32.totalorder %s18, 1
      %s275 = scalar_select %p274, %s18, 1
      %s276 = smul.addr %s275, 32
      %s277 = smul.addr %s276, 8
      %s278 = scalar_lea.vmem %s7, %s277
      %v280 = vld [vmem:[%s273] sm:$0xff]
      %v281 = vld [vmem:[%s273 + $0x8] sm:$0xff]
      %v282 = vld [vmem:[%s273 + $0x10] sm:$0xff]
      %v283 = vld [vmem:[%s273 + $0x18] sm:$0xff]
      %v284 = vld [vmem:[%s273 + $0x20] sm:$0xff]
      %v285 = vld [vmem:[%s273 + $0x28] sm:$0xff]
      %v286 = vld [vmem:[%s273 + $0x30] sm:$0xff]
      %v287 = vld [vmem:[%s273 + $0x38] sm:$0xff]
      %v288 = vld [vmem:[%s273 + $0x40] sm:$0xff]
      %v289 = vld [vmem:[%s273 + $0x48] sm:$0xff]
      %v290 = vld [vmem:[%s273 + $0x50] sm:$0xff]
      %v291 = vld [vmem:[%s273 + $0x58] sm:$0xff]
      %v292 = vld [vmem:[%s273 + $0x60] sm:$0xff]
      %v293 = vld [vmem:[%s273 + $0x68] sm:$0xff]
      %v294 = vld [vmem:[%s273 + $0x70] sm:$0xff]
      %v295 = vld [vmem:[%s273 + $0x78] sm:$0xff]
      %v296 = vld [vmem:[%s273 + $0x80] sm:$0xff]
      %v297 = vld [vmem:[%s273 + $0x88] sm:$0xff]
      %v298 = vld [vmem:[%s273 + $0x90] sm:$0xff]
      %v299 = vld [vmem:[%s273 + $0x98] sm:$0xff]
      %v300 = vld [vmem:[%s273 + $0xa0] sm:$0xff]
      %v301 = vld [vmem:[%s273 + $0xa8] sm:$0xff]
      %v302 = vld [vmem:[%s273 + $0xb0] sm:$0xff]
      %v303 = vld [vmem:[%s273 + $0xb8] sm:$0xff]
      %v304 = vld [vmem:[%s273 + $0xc0] sm:$0xff]
      %v305 = vld [vmem:[%s273 + $0xc8] sm:$0xff]
      %v306 = vld [vmem:[%s273 + $0xd0] sm:$0xff]
      %v307 = vld [vmem:[%s273 + $0xd8] sm:$0xff]
      %v308 = vld [vmem:[%s273 + $0xe0] sm:$0xff]
      %v309 = vld [vmem:[%s273 + $0xe8] sm:$0xff]
      %v310 = vld [vmem:[%s273 + $0xf0] sm:$0xff]
      %v311 = vld [vmem:[%s273 + $0xf8] sm:$0xff]
      %312 = vxpose.xlu0.b32.start [1/16] %v280, 128
      %313 = vxpose.xlu0.b32.cont [2/16] %v282, 128
      %314 = vxpose.xlu0.b32.cont [3/16] %v284, 128
      %315 = vxpose.xlu0.b32.cont [4/16] %v286, 128
      %316 = vxpose.xlu0.b32.cont [5/16] %v288, 128
      %317 = vxpose.xlu0.b32.cont [6/16] %v290, 128
      %318 = vxpose.xlu0.b32.cont [7/16] %v292, 128
      %319 = vxpose.xlu0.b32.cont [8/16] %v294, 128
      %320 = vxpose.xlu0.b32.cont [9/16] %v296, 128
      %321 = vxpose.xlu0.b32.cont [10/16] %v298, 128
      %322 = vxpose.xlu0.b32.cont [11/16] %v300, 128
      %323 = vxpose.xlu0.b32.cont [12/16] %v302, 128
      %324 = vxpose.xlu0.b32.cont [13/16] %v304, 128
      %325 = vxpose.xlu0.b32.cont [14/16] %v306, 128
      %326 = vxpose.xlu0.b32.cont [15/16] %v308, 128
      %327 = vxpose.xlu0.b32.end [16/16] %v310, 128
      %v328 = vpop.trf.xlu0
      %v329 = vpop.trf.xlu0
      %v330 = vpop.trf.xlu0
      %v331 = vpop.trf.xlu0
      %v332 = vpop.trf.xlu0
      %v333 = vpop.trf.xlu0
      %v334 = vpop.trf.xlu0
      %v335 = vpop.trf.xlu0
      %v336 = vpop.trf.xlu0
      %v337 = vpop.trf.xlu0
      %v338 = vpop.trf.xlu0
      %v339 = vpop.trf.xlu0
      %v340 = vpop.trf.xlu0
      %v341 = vpop.trf.xlu0
      %v342 = vpop.trf.xlu0
      %v343 = vpop.trf.xlu0
      %344 = vxpose.xlu0.b32.start [1/16] %v281, 128
      %345 = vxpose.xlu0.b32.cont [2/16] %v283, 128
      %346 = vxpose.xlu0.b32.cont [3/16] %v285, 128
      %347 = vxpose.xlu0.b32.cont [4/16] %v287, 128
      %348 = vxpose.xlu0.b32.cont [5/16] %v289, 128
      %349 = vxpose.xlu0.b32.cont [6/16] %v291, 128
      %350 = vxpose.xlu0.b32.cont [7/16] %v293, 128
      %351 = vxpose.xlu0.b32.cont [8/16] %v295, 128
      %352 = vxpose.xlu0.b32.cont [9/16] %v297, 128
      %353 = vxpose.xlu0.b32.cont [10/16] %v299, 128
      %354 = vxpose.xlu0.b32.cont [11/16] %v301, 128
      %355 = vxpose.xlu0.b32.cont [12/16] %v303, 128
      %356 = vxpose.xlu0.b32.cont [13/16] %v305, 128
      %357 = vxpose.xlu0.b32.cont [14/16] %v307, 128
      %358 = vxpose.xlu0.b32.cont [15/16] %v309, 128
      %359 = vxpose.xlu0.b32.end [16/16] %v311, 128
      %v360 = vpop.trf.xlu0
      %v361 = vpop.trf.xlu0
      %v362 = vpop.trf.xlu0
      %v363 = vpop.trf.xlu0
      %v364 = vpop.trf.xlu0
      %v365 = vpop.trf.xlu0
      %v366 = vpop.trf.xlu0
      %v367 = vpop.trf.xlu0
      %v368 = vpop.trf.xlu0
      %v369 = vpop.trf.xlu0
      %v370 = vpop.trf.xlu0
      %v371 = vpop.trf.xlu0
      %v372 = vpop.trf.xlu0
      %v373 = vpop.trf.xlu0
      %v374 = vpop.trf.xlu0
      %v375 = vpop.trf.xlu0
      %v376 = vpack.c.bf16 %v329, %v328
      %v377 = vpack.c.bf16 %v331, %v330
      %v378 = vpack.c.bf16 %v333, %v332
      %v379 = vpack.c.bf16 %v335, %v334
      %v380 = vpack.c.bf16 %v337, %v336
      %v381 = vpack.c.bf16 %v339, %v338
      %v382 = vpack.c.bf16 %v341, %v340
      %v383 = vpack.c.bf16 %v343, %v342
      %v384 = vpack.c.bf16 %v361, %v360
      %v385 = vpack.c.bf16 %v363, %v362
      %v386 = vpack.c.bf16 %v365, %v364
      %v387 = vpack.c.bf16 %v367, %v366
      %v388 = vpack.c.bf16 %v369, %v368
      %v389 = vpack.c.bf16 %v371, %v370
      %v390 = vpack.c.bf16 %v373, %v372
      %v391 = vpack.c.bf16 %v375, %v374
      %v392 = vld [vmem:[%s1] sm:$0xf]
      %v393 = vld [vmem:[%s1 + $0x4] sm:$0xf]
      %v394 = vld [vmem:[%s1 + $0x8] sm:$0xf]
      %v395 = vld [vmem:[%s1 + $0xc] sm:$0xf]
      %v396 = vld [vmem:[%s1 + $0x10] sm:$0xf]
      %v397 = vld [vmem:[%s1 + $0x14] sm:$0xf]
      %v398 = vld [vmem:[%s1 + $0x18] sm:$0xf]
      %v399 = vld [vmem:[%s1 + $0x1c] sm:$0xf]
      %v400 = vld [vmem:[%s1 + $0x20] sm:$0xf]
      %v401 = vld [vmem:[%s1 + $0x24] sm:$0xf]
      %v402 = vld [vmem:[%s1 + $0x28] sm:$0xf]
      %v403 = vld [vmem:[%s1 + $0x2c] sm:$0xf]
      %v404 = vld [vmem:[%s1 + $0x30] sm:$0xf]
      %v405 = vld [vmem:[%s1 + $0x34] sm:$0xf]
      %v406 = vld [vmem:[%s1 + $0x38] sm:$0xf]
      %v407 = vld [vmem:[%s1 + $0x3c] sm:$0xf]
      %v408 = vld [vmem:[%s2] sm:$0x1]
      %v410 = vlaneseq
      %v411 = vshrl.u32 %v410, 7
      %v412 = vsub.s32 0, %v411
      %v413 = vrot.slane %v408, %v412
      %v431 = vunpack.c.l.b16 %v392
      %v432 = vunpack.c.l.b16 %v393
      %v433 = vunpack.c.l.b16 %v394
      %v434 = vunpack.c.l.b16 %v395
      %v435 = vunpack.c.l.b16 %v396
      %v436 = vunpack.c.l.b16 %v397
      %v437 = vunpack.c.l.b16 %v398
      %v438 = vunpack.c.l.b16 %v399
      %v439 = vunpack.c.l.b16 %v400
      %v440 = vunpack.c.l.b16 %v401
      %v441 = vunpack.c.l.b16 %v402
      %v442 = vunpack.c.l.b16 %v403
      %v443 = vunpack.c.l.b16 %v404
      %v444 = vunpack.c.l.b16 %v405
      %v445 = vunpack.c.l.b16 %v406
      %v446 = vunpack.c.l.b16 %v407
      %v447 = vpack.c.b16 %v432, %v431
      %v448 = vpack.c.b16 %v434, %v433
      %v449 = vpack.c.b16 %v436, %v435
      %v450 = vpack.c.b16 %v438, %v437
      %v451 = vpack.c.b16 %v440, %v439
      %v452 = vpack.c.b16 %v442, %v441
      %v453 = vpack.c.b16 %v444, %v443
      %v454 = vpack.c.b16 %v446, %v445
      %463 = vmatprep.subr.bf16.mxu0 0
      %464 = vmatpush1.bf16.msra.mxu0 %v454
      %465 = vmatprep.subr.bf16.mxu0 0
      %466 = vmatpush1.bf16.msra.mxu0 %v453
      %467 = vmatprep.subr.bf16.mxu0 0
      %468 = vmatpush1.bf16.msra.mxu0 %v452
      %469 = vmatprep.subr.bf16.mxu0 0
      %470 = vmatpush1.bf16.msra.mxu0 %v451
      %471 = vmatprep.subr.bf16.mxu0 0
      %472 = vmatpush1.bf16.msra.mxu0 %v450
      %473 = vmatprep.subr.bf16.mxu0 0
      %474 = vmatpush1.bf16.msra.mxu0 %v449
      %475 = vmatprep.subr.bf16.mxu0 0
      %476 = vmatpush1.bf16.msra.mxu0 %v448
      %477 = vmatprep.subr.bf16.mxu0 0
      %478 = vmatpush1.bf16.msra.mxu0 %v447
      %479 = vmatprep.subr.bf16.mxu0 0
      %480 = vmatpush2.bf16.msra.mxu0 0
      %481 = vmatprep.subr.bf16.mxu0 0
      %482 = vmatpush2.bf16.msra.mxu0 0
      %483 = vmatprep.subr.bf16.mxu0 0
      %484 = vmatpush2.bf16.msra.mxu0 0
      %485 = vmatprep.subr.bf16.mxu0 0
      %486 = vmatpush2.bf16.msra.mxu0 0
      %487 = vmatprep.subr.bf16.mxu0 0
      %488 = vmatpush2.bf16.msra.mxu0 0
      %489 = vmatprep.subr.bf16.mxu0 0
      %490 = vmatpush2.bf16.msra.mxu0 0
      %491 = vmatprep.subr.bf16.mxu0 0
      %492 = vmatpush2.bf16.msra.mxu0 0
      %493 = vmatprep.subr.bf16.mxu0 0
      %494 = vmatpush2.bf16.msra.mxu0 0
      %495 = vmatprep.mubr.bf16.mxu0 0
      %496 = vmatmul.mubr.bf16.gmra.mxu0 %v376
      %v497 = vpop.f32.mrf.mxu0
      %v498 = vadd.f32 %v413, %v497
      %v499 = vpop.f32.mrf.mxu0
      %v500 = vpop.f32.mrf.mxu0
      %v501 = vadd.f32 %v413, %v500
      %v502 = vpop.f32.mrf.mxu0
      %503 = vmatprep.mubr.bf16.mxu0 0
      %504 = vmatmul.mubr.bf16.gmra.mxu0 %v377
      %v505 = vpop.f32.mrf.mxu0
      %v506 = vadd.f32 %v413, %v505
      %v507 = vpop.f32.mrf.mxu0
      %v508 = vpop.f32.mrf.mxu0
      %v509 = vadd.f32 %v413, %v508
      %v510 = vpop.f32.mrf.mxu0
      %511 = vmatprep.mubr.bf16.mxu0 0
      %512 = vmatmul.mubr.bf16.gmra.mxu0 %v378
      %v513 = vpop.f32.mrf.mxu0
      %v514 = vadd.f32 %v413, %v513
      %v515 = vpop.f32.mrf.mxu0
      %v516 = vpop.f32.mrf.mxu0
      %v517 = vadd.f32 %v413, %v516
      %v518 = vpop.f32.mrf.mxu0
      %519 = vmatprep.mubr.bf16.mxu0 0
      %520 = vmatmul.mubr.bf16.gmra.mxu0 %v379
      %v521 = vpop.f32.mrf.mxu0
      %v522 = vadd.f32 %v413, %v521
      %v523 = vpop.f32.mrf.mxu0
      %v524 = vpop.f32.mrf.mxu0
      %v525 = vadd.f32 %v413, %v524
      %v526 = vpop.f32.mrf.mxu0
      %527 = vmatprep.mubr.bf16.mxu0 0
      %528 = vmatmul.mubr.bf16.gmra.mxu0 %v380
      %v529 = vpop.f32.mrf.mxu0
      %v530 = vadd.f32 %v413, %v529
      %v531 = vpop.f32.mrf.mxu0
      %v532 = vpop.f32.mrf.mxu0
      %v533 = vadd.f32 %v413, %v532
      %v534 = vpop.f32.mrf.mxu0
      %535 = vmatprep.mubr.bf16.mxu0 0
      %536 = vmatmul.mubr.bf16.gmra.mxu0 %v381
      %v537 = vpop.f32.mrf.mxu0
      %v538 = vadd.f32 %v413, %v537
      %v539 = vpop.f32.mrf.mxu0
      %v540 = vpop.f32.mrf.mxu0
      %v541 = vadd.f32 %v413, %v540
      %v542 = vpop.f32.mrf.mxu0
      %543 = vmatprep.mubr.bf16.mxu0 0
      %544 = vmatmul.mubr.bf16.gmra.mxu0 %v382
      %v545 = vpop.f32.mrf.mxu0
      %v546 = vadd.f32 %v413, %v545
      %v547 = vpop.f32.mrf.mxu0
      %v548 = vpop.f32.mrf.mxu0
      %v549 = vadd.f32 %v413, %v548
      %v550 = vpop.f32.mrf.mxu0
      %551 = vmatprep.mubr.bf16.mxu0 0
      %552 = vmatmul.mubr.bf16.gmra.mxu0 %v383
      %v553 = vpop.f32.mrf.mxu0
      %v554 = vadd.f32 %v413, %v553
      %v555 = vpop.f32.mrf.mxu0
      %v556 = vpop.f32.mrf.mxu0
      %v557 = vadd.f32 %v413, %v556
      %v558 = vpop.f32.mrf.mxu0
      %559 = vmatprep.mubr.bf16.mxu0 0
      %560 = vmatmul.mubr.bf16.gmra.mxu0 %v384
      %v561 = vpop.f32.mrf.mxu0
      %v562 = vadd.f32 %v413, %v561
      %v563 = vpop.f32.mrf.mxu0
      %v564 = vpop.f32.mrf.mxu0
      %v565 = vadd.f32 %v413, %v564
      %v566 = vpop.f32.mrf.mxu0
      %567 = vmatprep.mubr.bf16.mxu0 0
      %568 = vmatmul.mubr.bf16.gmra.mxu0 %v385
      %v569 = vpop.f32.mrf.mxu0
      %v570 = vadd.f32 %v413, %v569
      %v571 = vpop.f32.mrf.mxu0
      %v572 = vpop.f32.mrf.mxu0
      %v573 = vadd.f32 %v413, %v572
      %v574 = vpop.f32.mrf.mxu0
      %575 = vmatprep.mubr.bf16.mxu0 0
      %576 = vmatmul.mubr.bf16.gmra.mxu0 %v386
      %v577 = vpop.f32.mrf.mxu0
      %v578 = vadd.f32 %v413, %v577
      %v579 = vpop.f32.mrf.mxu0
      %v580 = vpop.f32.mrf.mxu0
      %v581 = vadd.f32 %v413, %v580
      %v582 = vpop.f32.mrf.mxu0
      %583 = vmatprep.mubr.bf16.mxu0 0
      %584 = vmatmul.mubr.bf16.gmra.mxu0 %v387
      %v585 = vpop.f32.mrf.mxu0
      %v586 = vadd.f32 %v413, %v585
      %v587 = vpop.f32.mrf.mxu0
      %v588 = vpop.f32.mrf.mxu0
      %v589 = vadd.f32 %v413, %v588
      %v590 = vpop.f32.mrf.mxu0
      %591 = vmatprep.mubr.bf16.mxu0 0
      %592 = vmatmul.mubr.bf16.gmra.mxu0 %v388
      %v593 = vpop.f32.mrf.mxu0
      %v594 = vadd.f32 %v413, %v593
      %v595 = vpop.f32.mrf.mxu0
      %v596 = vpop.f32.mrf.mxu0
      %v597 = vadd.f32 %v413, %v596
      %v598 = vpop.f32.mrf.mxu0
      %599 = vmatprep.mubr.bf16.mxu0 0
      %600 = vmatmul.mubr.bf16.gmra.mxu0 %v389
      %v601 = vpop.f32.mrf.mxu0
      %v602 = vadd.f32 %v413, %v601
      %v603 = vpop.f32.mrf.mxu0
      %v604 = vpop.f32.mrf.mxu0
      %v605 = vadd.f32 %v413, %v604
      %v606 = vpop.f32.mrf.mxu0
      %607 = vmatprep.mubr.bf16.mxu0 0
      %608 = vmatmul.mubr.bf16.gmra.mxu0 %v390
      %v609 = vpop.f32.mrf.mxu0
      %v610 = vadd.f32 %v413, %v609
      %v611 = vpop.f32.mrf.mxu0
      %v612 = vpop.f32.mrf.mxu0
      %v613 = vadd.f32 %v413, %v612
      %v614 = vpop.f32.mrf.mxu0
      %615 = vmatprep.mubr.bf16.mxu0 0
      %616 = vmatmul.mubr.bf16.gmra.mxu0 %v391
      %v617 = vpop.f32.mrf.mxu0
      %v618 = vadd.f32 %v413, %v617
      %v619 = vpop.f32.mrf.mxu0
      %v620 = vpop.f32.mrf.mxu0
      %v621 = vadd.f32 %v413, %v620
      %v622 = vpop.f32.mrf.mxu0
      %623 = vdwg.mxu0
      %v624 = vmax.f32 %v498, 0.0
      %v625 = vmax.f32 %v501, 0.0
      %v626 = vmax.f32 %v506, 0.0
      %v627 = vmax.f32 %v509, 0.0
      %v628 = vmax.f32 %v514, 0.0
      %v629 = vmax.f32 %v517, 0.0
      %v630 = vmax.f32 %v522, 0.0
      %v631 = vmax.f32 %v525, 0.0
      %v632 = vmax.f32 %v530, 0.0
      %v633 = vmax.f32 %v533, 0.0
      %v634 = vmax.f32 %v538, 0.0
      %v635 = vmax.f32 %v541, 0.0
      %v636 = vmax.f32 %v546, 0.0
      %v637 = vmax.f32 %v549, 0.0
      %v638 = vmax.f32 %v554, 0.0
      %v639 = vmax.f32 %v557, 0.0
      %v640 = vmax.f32 %v562, 0.0
      %v641 = vmax.f32 %v565, 0.0
      %v642 = vmax.f32 %v570, 0.0
      %v643 = vmax.f32 %v573, 0.0
      %v644 = vmax.f32 %v578, 0.0
      %v645 = vmax.f32 %v581, 0.0
      %v646 = vmax.f32 %v586, 0.0
      %v647 = vmax.f32 %v589, 0.0
      %v648 = vmax.f32 %v594, 0.0
      %v649 = vmax.f32 %v597, 0.0
      %v650 = vmax.f32 %v602, 0.0
      %v651 = vmax.f32 %v605, 0.0
      %v652 = vmax.f32 %v610, 0.0
      %v653 = vmax.f32 %v613, 0.0
      %v654 = vmax.f32 %v618, 0.0
      %v655 = vmax.f32 %v621, 0.0
      %v656 = vmin.f32 %v624, 20.0
      %v657 = vmin.f32 %v625, 20.0
      %v658 = vmin.f32 %v626, 20.0
      %v659 = vmin.f32 %v627, 20.0
      %v660 = vmin.f32 %v628, 20.0
      %v661 = vmin.f32 %v629, 20.0
      %v662 = vmin.f32 %v630, 20.0
      %v663 = vmin.f32 %v631, 20.0
      %v664 = vmin.f32 %v632, 20.0
      %v665 = vmin.f32 %v633, 20.0
      %v666 = vmin.f32 %v634, 20.0
      %v667 = vmin.f32 %v635, 20.0
      %v668 = vmin.f32 %v636, 20.0
      %v669 = vmin.f32 %v637, 20.0
      %v670 = vmin.f32 %v638, 20.0
      %v671 = vmin.f32 %v639, 20.0
      %v672 = vmin.f32 %v640, 20.0
      %v673 = vmin.f32 %v641, 20.0
      %v674 = vmin.f32 %v642, 20.0
      %v675 = vmin.f32 %v643, 20.0
      %v676 = vmin.f32 %v644, 20.0
      %v677 = vmin.f32 %v645, 20.0
      %v678 = vmin.f32 %v646, 20.0
      %v679 = vmin.f32 %v647, 20.0
      %v680 = vmin.f32 %v648, 20.0
      %v681 = vmin.f32 %v649, 20.0
      %v682 = vmin.f32 %v650, 20.0
      %v683 = vmin.f32 %v651, 20.0
      %v684 = vmin.f32 %v652, 20.0
      %v685 = vmin.f32 %v653, 20.0
      %v686 = vmin.f32 %v654, 20.0
      %v687 = vmin.f32 %v655, 20.0
      %vm688 = vcmask 261120
      %689 = vst.msk [vmem:[#allocation2] sm:$0xff] %vm688, 0.0
      %690 = vst.msk [vmem:[#allocation2 + $0x8] sm:$0xff] %vm688, 0.0
      %vm691 = vcmask 254976
      %692 = vst.msk [vmem:[#allocation2 + $0x10] sm:$0x3] %vm691, 0.0
      %693 = vst.msk [vmem:[#allocation2 + $0x18] sm:$0xff] %vm688, 0.0
      %694 = vst.msk [vmem:[#allocation2 + $0x20] sm:$0xff] %vm688, 0.0
      %695 = vst.msk [vmem:[#allocation2 + $0x28] sm:$0x3] %vm691, 0.0
      %696 = vst.msk [vmem:[#allocation2 + $0x30] sm:$0xff] %vm688, 0.0
      %697 = vst.msk [vmem:[#allocation2 + $0x38] sm:$0xff] %vm688, 0.0
      %698 = vst.msk [vmem:[#allocation2 + $0x40] sm:$0x3] %vm691, 0.0
      %699 = vst.msk [vmem:[#allocation2 + $0x48] sm:$0xff] %vm688, 0.0
      %700 = vst.msk [vmem:[#allocation2 + $0x50] sm:$0xff] %vm688, 0.0
      %701 = vst.msk [vmem:[#allocation2 + $0x58] sm:$0x3] %vm691, 0.0
      %702 = vst.msk [vmem:[#allocation2 + $0x60] sm:$0xff] %vm688, 0.0
      %703 = vst.msk [vmem:[#allocation2 + $0x68] sm:$0xff] %vm688, 0.0
      %704 = vst.msk [vmem:[#allocation2 + $0x70] sm:$0x3] %vm691, 0.0
      %705 = vst.msk [vmem:[#allocation2 + $0x78] sm:$0xff] %vm688, 0.0
      %706 = vst.msk [vmem:[#allocation2 + $0x80] sm:$0xff] %vm688, 0.0
      %707 = vst.msk [vmem:[#allocation2 + $0x88] sm:$0x3] %vm691, 0.0
      %708 = vst.msk [vmem:[#allocation2 + $0x90] sm:$0xff] %vm688, 0.0
      %709 = vst.msk [vmem:[#allocation2 + $0x98] sm:$0xff] %vm688, 0.0
      %710 = vst.msk [vmem:[#allocation2 + $0xa0] sm:$0x3] %vm691, 0.0
      %711 = vst.msk [vmem:[#allocation2 + $0xa8] sm:$0xff] %vm688, 0.0
      %712 = vst.msk [vmem:[#allocation2 + $0xb0] sm:$0xff] %vm688, 0.0
      %713 = vst.msk [vmem:[#allocation2 + $0xb8] sm:$0x3] %vm691, 0.0
      %714 = vst.msk [vmem:[#allocation2 + $0xc0] sm:$0xff] %vm688, 0.0
      %715 = vst.msk [vmem:[#allocation2 + $0xc8] sm:$0xff] %vm688, 0.0
      %716 = vst.msk [vmem:[#allocation2 + $0xd0] sm:$0x3] %vm691, 0.0
      %717 = vst.msk [vmem:[#allocation2 + $0xd8] sm:$0xff] %vm688, 0.0
      %718 = vst.msk [vmem:[#allocation2 + $0xe0] sm:$0xff] %vm688, 0.0
      %719 = vst.msk [vmem:[#allocation2 + $0xe8] sm:$0x3] %vm691, 0.0
      %720 = vst.msk [vmem:[#allocation2 + $0xf0] sm:$0xff] %vm688, 0.0
      %721 = vst.msk [vmem:[#allocation2 + $0xf8] sm:$0xff] %vm688, 0.0
      %722 = vst.msk [vmem:[#allocation2 + $0x100] sm:$0x3] %vm691, 0.0
      %723 = vst.msk [vmem:[#allocation2 + $0x108] sm:$0xff] %vm688, 0.0
      %724 = vst.msk [vmem:[#allocation2 + $0x110] sm:$0xff] %vm688, 0.0
      %725 = vst.msk [vmem:[#allocation2 + $0x118] sm:$0x3] %vm691, 0.0
      %726 = vst.msk [vmem:[#allocation2 + $0x120] sm:$0xff] %vm688, 0.0
      %727 = vst.msk [vmem:[#allocation2 + $0x128] sm:$0xff] %vm688, 0.0
      %728 = vst.msk [vmem:[#allocation2 + $0x130] sm:$0x3] %vm691, 0.0
      %729 = vst.msk [vmem:[#allocation2 + $0x138] sm:$0xff] %vm688, 0.0
      %730 = vst.msk [vmem:[#allocation2 + $0x140] sm:$0xff] %vm688, 0.0
      %731 = vst.msk [vmem:[#allocation2 + $0x148] sm:$0x3] %vm691, 0.0
      %732 = vst.msk [vmem:[#allocation2 + $0x150] sm:$0xff] %vm688, 0.0
      %733 = vst.msk [vmem:[#allocation2 + $0x158] sm:$0xff] %vm688, 0.0
      %734 = vst.msk [vmem:[#allocation2 + $0x160] sm:$0x3] %vm691, 0.0
      %735 = vst.msk [vmem:[#allocation2 + $0x168] sm:$0xff] %vm688, 0.0
      %736 = vst.msk [vmem:[#allocation2 + $0x170] sm:$0xff] %vm688, 0.0
      %737 = vst.msk [vmem:[#allocation2 + $0x178] sm:$0x3] %vm691, 0.0
      %738 = vst.msk [vmem:[#allocation2 + $0x180] sm:$0xff] %vm688, 0.0
      %739 = vst.msk [vmem:[#allocation2 + $0x188] sm:$0xff] %vm688, 0.0
      %740 = vst.msk [vmem:[#allocation2 + $0x190] sm:$0x3] %vm691, 0.0
      %741 = vst.msk [vmem:[#allocation2 + $0x198] sm:$0xff] %vm688, 0.0
      %742 = vst.msk [vmem:[#allocation2 + $0x1a0] sm:$0xff] %vm688, 0.0
      %743 = vst.msk [vmem:[#allocation2 + $0x1a8] sm:$0x3] %vm691, 0.0
      %s744 = scalar_lea.vmem [#allocation2], 24
      %745 = vst.msk [vmem:[%s744 + $0x1] sm:$0xff] %vm688, %v656
      %746 = vst.msk [vmem:[%s744 + $0x9] sm:$0xff] %vm688, %v657
      %747 = vst.msk [vmem:[%s744 + $0x19] sm:$0xff] %vm688, %v658
      %748 = vst.msk [vmem:[%s744 + $0x21] sm:$0xff] %vm688, %v659
      %749 = vst.msk [vmem:[%s744 + $0x31] sm:$0xff] %vm688, %v660
      %750 = vst.msk [vmem:[%s744 + $0x39] sm:$0xff] %vm688, %v661
      %751 = vst.msk [vmem:[%s744 + $0x49] sm:$0xff] %vm688, %v662
      %752 = vst.msk [vmem:[%s744 + $0x51] sm:$0xff] %vm688, %v663
      %753 = vst.msk [vmem:[%s744 + $0x61] sm:$0xff] %vm688, %v664
      %754 = vst.msk [vmem:[%s744 + $0x69] sm:$0xff] %vm688, %v665
      %755 = vst.msk [vmem:[%s744 + $0x79] sm:$0xff] %vm688, %v666
      %756 = vst.msk [vmem:[%s744 + $0x81] sm:$0xff] %vm688, %v667
      %757 = vst.msk [vmem:[%s744 + $0x91] sm:$0xff] %vm688, %v668
      %758 = vst.msk [vmem:[%s744 + $0x99] sm:$0xff] %vm688, %v669
      %759 = vst.msk [vmem:[%s744 + $0xa9] sm:$0xff] %vm688, %v670
      %760 = vst.msk [vmem:[%s744 + $0xb1] sm:$0xff] %vm688, %v671
      %761 = vst.msk [vmem:[%s744 + $0xc1] sm:$0xff] %vm688, %v672
      %762 = vst.msk [vmem:[%s744 + $0xc9] sm:$0xff] %vm688, %v673
      %763 = vst.msk [vmem:[%s744 + $0xd9] sm:$0xff] %vm688, %v674
      %764 = vst.msk [vmem:[%s744 + $0xe1] sm:$0xff] %vm688, %v675
      %765 = vst.msk [vmem:[%s744 + $0xf1] sm:$0xff] %vm688, %v676
      %766 = vst.msk [vmem:[%s744 + $0xf9] sm:$0xff] %vm688, %v677
      %767 = vst.msk [vmem:[%s744 + $0x109] sm:$0xff] %vm688, %v678
      %768 = vst.msk [vmem:[%s744 + $0x111] sm:$0xff] %vm688, %v679
      %769 = vst.msk [vmem:[%s744 + $0x121] sm:$0xff] %vm688, %v680
      %770 = vst.msk [vmem:[%s744 + $0x129] sm:$0xff] %vm688, %v681
      %771 = vst.msk [vmem:[%s744 + $0x139] sm:$0xff] %vm688, %v682
      %772 = vst.msk [vmem:[%s744 + $0x141] sm:$0xff] %vm688, %v683
      %773 = vst.msk [vmem:[%s744 + $0x151] sm:$0xff] %vm688, %v684
      %774 = vst.msk [vmem:[%s744 + $0x159] sm:$0xff] %vm688, %v685
      %775 = vst.msk [vmem:[%s744 + $0x169] sm:$0xff] %vm688, %v686
      %776 = vst.msk [vmem:[%s744 + $0x171] sm:$0xff] %vm688, %v687
      %v777 = vld [vmem:[#allocation2] sm:$0xff]
      %v778 = vld [vmem:[#allocation2 + $0x8] sm:$0xff]
      %v779 = vld [vmem:[#allocation2 + $0x18] sm:$0xff]
      %v780 = vld [vmem:[#allocation2 + $0x20] sm:$0xff]
      %v781 = vld [vmem:[#allocation2 + $0x30] sm:$0xff]
      %v782 = vld [vmem:[#allocation2 + $0x38] sm:$0xff]
      %v783 = vld [vmem:[#allocation2 + $0x48] sm:$0xff]
      %v784 = vld [vmem:[#allocation2 + $0x50] sm:$0xff]
      %v785 = vld [vmem:[#allocation2 + $0x60] sm:$0xff]
      %v786 = vld [vmem:[#allocation2 + $0x68] sm:$0xff]
      %v787 = vld [vmem:[#allocation2 + $0x78] sm:$0xff]
      %v788 = vld [vmem:[#allocation2 + $0x80] sm:$0xff]
      %v789 = vld [vmem:[#allocation2 + $0x90] sm:$0xff]
      %v790 = vld [vmem:[#allocation2 + $0x98] sm:$0xff]
      %v791 = vld [vmem:[#allocation2 + $0xa8] sm:$0xff]
      %v792 = vld [vmem:[#allocation2 + $0xb0] sm:$0xff]
      %v793 = vld [vmem:[#allocation2 + $0xc0] sm:$0xff]
      %v794 = vld [vmem:[#allocation2 + $0xc8] sm:$0xff]
      %v795 = vld [vmem:[#allocation2 + $0xd8] sm:$0xff]
      %v796 = vld [vmem:[#allocation2 + $0xe0] sm:$0xff]
      %v797 = vld [vmem:[#allocation2 + $0xf0] sm:$0xff]
      %v798 = vld [vmem:[#allocation2 + $0xf8] sm:$0xff]
      %v799 = vld [vmem:[#allocation2 + $0x108] sm:$0xff]
      %v800 = vld [vmem:[#allocation2 + $0x110] sm:$0xff]
      %v801 = vld [vmem:[#allocation2 + $0x120] sm:$0xff]
      %v802 = vld [vmem:[#allocation2 + $0x128] sm:$0xff]
      %v803 = vld [vmem:[#allocation2 + $0x138] sm:$0xff]
      %v804 = vld [vmem:[#allocation2 + $0x140] sm:$0xff]
      %v805 = vld [vmem:[#allocation2 + $0x150] sm:$0xff]
      %v806 = vld [vmem:[#allocation2 + $0x158] sm:$0xff]
      %v807 = vld [vmem:[#allocation2 + $0x168] sm:$0xff]
      %v808 = vld [vmem:[#allocation2 + $0x170] sm:$0xff]
      %v809 = vld [vmem:[#allocation2 + $0x1] sm:$0xff]
      %v810 = vld [vmem:[#allocation2 + $0x9] sm:$0xff]
      %v811 = vld [vmem:[#allocation2 + $0x19] sm:$0xff]
      %v812 = vld [vmem:[#allocation2 + $0x21] sm:$0xff]
      %v813 = vld [vmem:[#allocation2 + $0x31] sm:$0xff]
      %v814 = vld [vmem:[#allocation2 + $0x39] sm:$0xff]
      %v815 = vld [vmem:[#allocation2 + $0x49] sm:$0xff]
      %v816 = vld [vmem:[#allocation2 + $0x51] sm:$0xff]
      %v817 = vld [vmem:[#allocation2 + $0x61] sm:$0xff]
      %v818 = vld [vmem:[#allocation2 + $0x69] sm:$0xff]
      %v819 = vld [vmem:[#allocation2 + $0x79] sm:$0xff]
      %v820 = vld [vmem:[#allocation2 + $0x81] sm:$0xff]
      %v821 = vld [vmem:[#allocation2 + $0x91] sm:$0xff]
      %v822 = vld [vmem:[#allocation2 + $0x99] sm:$0xff]
      %v823 = vld [vmem:[#allocation2 + $0xa9] sm:$0xff]
      %v824 = vld [vmem:[#allocation2 + $0xb1] sm:$0xff]
      %v825 = vld [vmem:[#allocation2 + $0xc1] sm:$0xff]
      %v826 = vld [vmem:[#allocation2 + $0xc9] sm:$0xff]
      %v827 = vld [vmem:[#allocation2 + $0xd9] sm:$0xff]
      %v828 = vld [vmem:[#allocation2 + $0xe1] sm:$0xff]
      %v829 = vld [vmem:[#allocation2 + $0xf1] sm:$0xff]
      %v830 = vld [vmem:[#allocation2 + $0xf9] sm:$0xff]
      %v831 = vld [vmem:[#allocation2 + $0x109] sm:$0xff]
      %v832 = vld [vmem:[#allocation2 + $0x111] sm:$0xff]
      %v833 = vld [vmem:[#allocation2 + $0x121] sm:$0xff]
      %v834 = vld [vmem:[#allocation2 + $0x129] sm:$0xff]
      %v835 = vld [vmem:[#allocation2 + $0x139] sm:$0xff]
      %v836 = vld [vmem:[#allocation2 + $0x141] sm:$0xff]
      %v837 = vld [vmem:[#allocation2 + $0x151] sm:$0xff]
      %v838 = vld [vmem:[#allocation2 + $0x159] sm:$0xff]
      %v839 = vld [vmem:[#allocation2 + $0x169] sm:$0xff]
      %v840 = vld [vmem:[#allocation2 + $0x171] sm:$0xff]
      %v841 = vld [vmem:[#allocation2 + $0x2] sm:$0xff]
      %v842 = vld [vmem:[#allocation2 + $0xa] sm:$0xff]
      %v843 = vld [vmem:[#allocation2 + $0x1a] sm:$0xff]
      %v844 = vld [vmem:[#allocation2 + $0x22] sm:$0xff]
      %v845 = vld [vmem:[#allocation2 + $0x32] sm:$0xff]
      %v846 = vld [vmem:[#allocation2 + $0x3a] sm:$0xff]
      %v847 = vld [vmem:[#allocation2 + $0x4a] sm:$0xff]
      %v848 = vld [vmem:[#allocation2 + $0x52] sm:$0xff]
      %v849 = vld [vmem:[#allocation2 + $0x62] sm:$0xff]
      %v850 = vld [vmem:[#allocation2 + $0x6a] sm:$0xff]
      %v851 = vld [vmem:[#allocation2 + $0x7a] sm:$0xff]
      %v852 = vld [vmem:[#allocation2 + $0x82] sm:$0xff]
      %v853 = vld [vmem:[#allocation2 + $0x92] sm:$0xff]
      %v854 = vld [vmem:[#allocation2 + $0x9a] sm:$0xff]
      %v855 = vld [vmem:[#allocation2 + $0xaa] sm:$0xff]
      %v856 = vld [vmem:[#allocation2 + $0xb2] sm:$0xff]
      %v857 = vld [vmem:[#allocation2 + $0xc2] sm:$0xff]
      %v858 = vld [vmem:[#allocation2 + $0xca] sm:$0xff]
      %v859 = vld [vmem:[#allocation2 + $0xda] sm:$0xff]
      %v860 = vld [vmem:[#allocation2 + $0xe2] sm:$0xff]
      %v861 = vld [vmem:[#allocation2 + $0xf2] sm:$0xff]
      %v862 = vld [vmem:[#allocation2 + $0xfa] sm:$0xff]
      %v863 = vld [vmem:[#allocation2 + $0x10a] sm:$0xff]
      %v864 = vld [vmem:[#allocation2 + $0x112] sm:$0xff]
      %v865 = vld [vmem:[#allocation2 + $0x122] sm:$0xff]
      %v866 = vld [vmem:[#allocation2 + $0x12a] sm:$0xff]
      %v867 = vld [vmem:[#allocation2 + $0x13a] sm:$0xff]
      %v868 = vld [vmem:[#allocation2 + $0x142] sm:$0xff]
      %v869 = vld [vmem:[#allocation2 + $0x152] sm:$0xff]
      %v870 = vld [vmem:[#allocation2 + $0x15a] sm:$0xff]
      %v871 = vld [vmem:[#allocation2 + $0x16a] sm:$0xff]
      %v872 = vld [vmem:[#allocation2 + $0x172] sm:$0xff]
      %v873 = vld [vmem:[%s744] sm:$0xff]
      %v874 = vld [vmem:[%s744 + $0x8] sm:$0xff]
      %v875 = vld [vmem:[%s744 + $0x18] sm:$0xff]
      %v876 = vld [vmem:[%s744 + $0x20] sm:$0xff]
      %v877 = vld [vmem:[%s744 + $0x30] sm:$0xff]
      %v878 = vld [vmem:[%s744 + $0x38] sm:$0xff]
      %v879 = vld [vmem:[%s744 + $0x48] sm:$0xff]
      %v880 = vld [vmem:[%s744 + $0x50] sm:$0xff]
      %v881 = vld [vmem:[%s744 + $0x60] sm:$0xff]
      %v882 = vld [vmem:[%s744 + $0x68] sm:$0xff]
      %v883 = vld [vmem:[%s744 + $0x78] sm:$0xff]
      %v884 = vld [vmem:[%s744 + $0x80] sm:$0xff]
      %v885 = vld [vmem:[%s744 + $0x90] sm:$0xff]
      %v886 = vld [vmem:[%s744 + $0x98] sm:$0xff]
      %v887 = vld [vmem:[%s744 + $0xa8] sm:$0xff]
      %v888 = vld [vmem:[%s744 + $0xb0] sm:$0xff]
      %v889 = vld [vmem:[%s744 + $0xc0] sm:$0xff]
      %v890 = vld [vmem:[%s744 + $0xc8] sm:$0xff]
      %v891 = vld [vmem:[%s744 + $0xd8] sm:$0xff]
      %v892 = vld [vmem:[%s744 + $0xe0] sm:$0xff]
      %v893 = vld [vmem:[%s744 + $0xf0] sm:$0xff]
      %v894 = vld [vmem:[%s744 + $0xf8] sm:$0xff]
      %v895 = vld [vmem:[%s744 + $0x108] sm:$0xff]
      %v896 = vld [vmem:[%s744 + $0x110] sm:$0xff]
      %v897 = vld [vmem:[%s744 + $0x120] sm:$0xff]
      %v898 = vld [vmem:[%s744 + $0x128] sm:$0xff]
      %v899 = vld [vmem:[%s744 + $0x138] sm:$0xff]
      %v900 = vld [vmem:[%s744 + $0x140] sm:$0xff]
      %v901 = vld [vmem:[%s744 + $0x150] sm:$0xff]
      %v902 = vld [vmem:[%s744 + $0x158] sm:$0xff]
      %v903 = vld [vmem:[%s744 + $0x168] sm:$0xff]
      %v904 = vld [vmem:[%s744 + $0x170] sm:$0xff]
      %v905 = vld [vmem:[%s744 + $0x1] sm:$0xff]
      %v906 = vld [vmem:[%s744 + $0x9] sm:$0xff]
      %v907 = vld [vmem:[%s744 + $0x19] sm:$0xff]
      %v908 = vld [vmem:[%s744 + $0x21] sm:$0xff]
      %v909 = vld [vmem:[%s744 + $0x31] sm:$0xff]
      %v910 = vld [vmem:[%s744 + $0x39] sm:$0xff]
      %v911 = vld [vmem:[%s744 + $0x49] sm:$0xff]
      %v912 = vld [vmem:[%s744 + $0x51] sm:$0xff]
      %v913 = vld [vmem:[%s744 + $0x61] sm:$0xff]
      %v914 = vld [vmem:[%s744 + $0x69] sm:$0xff]
      %v915 = vld [vmem:[%s744 + $0x79] sm:$0xff]
      %v916 = vld [vmem:[%s744 + $0x81] sm:$0xff]
      %v917 = vld [vmem:[%s744 + $0x91] sm:$0xff]
      %v918 = vld [vmem:[%s744 + $0x99] sm:$0xff]
      %v919 = vld [vmem:[%s744 + $0xa9] sm:$0xff]
      %v920 = vld [vmem:[%s744 + $0xb1] sm:$0xff]
      %v921 = vld [vmem:[%s744 + $0xc1] sm:$0xff]
      %v922 = vld [vmem:[%s744 + $0xc9] sm:$0xff]
      %v923 = vld [vmem:[%s744 + $0xd9] sm:$0xff]
      %v924 = vld [vmem:[%s744 + $0xe1] sm:$0xff]
      %v925 = vld [vmem:[%s744 + $0xf1] sm:$0xff]
      %v926 = vld [vmem:[%s744 + $0xf9] sm:$0xff]
      %v927 = vld [vmem:[%s744 + $0x109] sm:$0xff]
      %v928 = vld [vmem:[%s744 + $0x111] sm:$0xff]
      %v929 = vld [vmem:[%s744 + $0x121] sm:$0xff]
      %v930 = vld [vmem:[%s744 + $0x129] sm:$0xff]
      %v931 = vld [vmem:[%s744 + $0x139] sm:$0xff]
      %v932 = vld [vmem:[%s744 + $0x141] sm:$0xff]
      %v933 = vld [vmem:[%s744 + $0x151] sm:$0xff]
      %v934 = vld [vmem:[%s744 + $0x159] sm:$0xff]
      %v935 = vld [vmem:[%s744 + $0x169] sm:$0xff]
      %v936 = vld [vmem:[%s744 + $0x171] sm:$0xff]
      %v937 = vld [vmem:[%s744 + $0x2] sm:$0xff]
      %v938 = vld [vmem:[%s744 + $0xa] sm:$0xff]
      %v939 = vld [vmem:[%s744 + $0x1a] sm:$0xff]
      %v940 = vld [vmem:[%s744 + $0x22] sm:$0xff]
      %v941 = vld [vmem:[%s744 + $0x32] sm:$0xff]
      %v942 = vld [vmem:[%s744 + $0x3a] sm:$0xff]
      %v943 = vld [vmem:[%s744 + $0x4a] sm:$0xff]
      %v944 = vld [vmem:[%s744 + $0x52] sm:$0xff]
      %v945 = vld [vmem:[%s744 + $0x62] sm:$0xff]
      %v946 = vld [vmem:[%s744 + $0x6a] sm:$0xff]
      %v947 = vld [vmem:[%s744 + $0x7a] sm:$0xff]
      %v948 = vld [vmem:[%s744 + $0x82] sm:$0xff]
      %v949 = vld [vmem:[%s744 + $0x92] sm:$0xff]
      %v950 = vld [vmem:[%s744 + $0x9a] sm:$0xff]
      %v951 = vld [vmem:[%s744 + $0xaa] sm:$0xff]
      %v952 = vld [vmem:[%s744 + $0xb2] sm:$0xff]
      %v953 = vld [vmem:[%s744 + $0xc2] sm:$0xff]
      %v954 = vld [vmem:[%s744 + $0xca] sm:$0xff]
      %v955 = vld [vmem:[%s744 + $0xda] sm:$0xff]
      %v956 = vld [vmem:[%s744 + $0xe2] sm:$0xff]
      %v957 = vld [vmem:[%s744 + $0xf2] sm:$0xff]
      %v958 = vld [vmem:[%s744 + $0xfa] sm:$0xff]
      %v959 = vld [vmem:[%s744 + $0x10a] sm:$0xff]
      %v960 = vld [vmem:[%s744 + $0x112] sm:$0xff]
      %v961 = vld [vmem:[%s744 + $0x122] sm:$0xff]
      %v962 = vld [vmem:[%s744 + $0x12a] sm:$0xff]
      %v963 = vld [vmem:[%s744 + $0x13a] sm:$0xff]
      %v964 = vld [vmem:[%s744 + $0x142] sm:$0xff]
      %v965 = vld [vmem:[%s744 + $0x152] sm:$0xff]
      %v966 = vld [vmem:[%s744 + $0x15a] sm:$0xff]
      %v967 = vld [vmem:[%s744 + $0x16a] sm:$0xff]
      %v968 = vld [vmem:[%s744 + $0x172] sm:$0xff]
      %s969 = scalar_lea.vmem [#allocation2], 48
      %v970 = vld [vmem:[%s969] sm:$0xff]
      %v971 = vld [vmem:[%s969 + $0x8] sm:$0xff]
      %v972 = vld [vmem:[%s969 + $0x18] sm:$0xff]
      %v973 = vld [vmem:[%s969 + $0x20] sm:$0xff]
      %v974 = vld [vmem:[%s969 + $0x30] sm:$0xff]
      %v975 = vld [vmem:[%s969 + $0x38] sm:$0xff]
      %v976 = vld [vmem:[%s969 + $0x48] sm:$0xff]
      %v977 = vld [vmem:[%s969 + $0x50] sm:$0xff]
      %v978 = vld [vmem:[%s969 + $0x60] sm:$0xff]
      %v979 = vld [vmem:[%s969 + $0x68] sm:$0xff]
      %v980 = vld [vmem:[%s969 + $0x78] sm:$0xff]
      %v981 = vld [vmem:[%s969 + $0x80] sm:$0xff]
      %v982 = vld [vmem:[%s969 + $0x90] sm:$0xff]
      %v983 = vld [vmem:[%s969 + $0x98] sm:$0xff]
      %v984 = vld [vmem:[%s969 + $0xa8] sm:$0xff]
      %v985 = vld [vmem:[%s969 + $0xb0] sm:$0xff]
      %v986 = vld [vmem:[%s969 + $0xc0] sm:$0xff]
      %v987 = vld [vmem:[%s969 + $0xc8] sm:$0xff]
      %v988 = vld [vmem:[%s969 + $0xd8] sm:$0xff]
      %v989 = vld [vmem:[%s969 + $0xe0] sm:$0xff]
      %v990 = vld [vmem:[%s969 + $0xf0] sm:$0xff]
      %v991 = vld [vmem:[%s969 + $0xf8] sm:$0xff]
      %v992 = vld [vmem:[%s969 + $0x108] sm:$0xff]
      %v993 = vld [vmem:[%s969 + $0x110] sm:$0xff]
      %v994 = vld [vmem:[%s969 + $0x120] sm:$0xff]
      %v995 = vld [vmem:[%s969 + $0x128] sm:$0xff]
      %v996 = vld [vmem:[%s969 + $0x138] sm:$0xff]
      %v997 = vld [vmem:[%s969 + $0x140] sm:$0xff]
      %v998 = vld [vmem:[%s969 + $0x150] sm:$0xff]
      %v999 = vld [vmem:[%s969 + $0x158] sm:$0xff]
      %v1000 = vld [vmem:[%s969 + $0x168] sm:$0xff]
      %v1001 = vld [vmem:[%s969 + $0x170] sm:$0xff]
      %v1002 = vld [vmem:[%s969 + $0x1] sm:$0xff]
      %v1003 = vld [vmem:[%s969 + $0x9] sm:$0xff]
      %v1004 = vld [vmem:[%s969 + $0x19] sm:$0xff]
      %v1005 = vld [vmem:[%s969 + $0x21] sm:$0xff]
      %v1006 = vld [vmem:[%s969 + $0x31] sm:$0xff]
      %v1007 = vld [vmem:[%s969 + $0x39] sm:$0xff]
      %v1008 = vld [vmem:[%s969 + $0x49] sm:$0xff]
      %v1009 = vld [vmem:[%s969 + $0x51] sm:$0xff]
      %v1010 = vld [vmem:[%s969 + $0x61] sm:$0xff]
      %v1011 = vld [vmem:[%s969 + $0x69] sm:$0xff]
      %v1012 = vld [vmem:[%s969 + $0x79] sm:$0xff]
      %v1013 = vld [vmem:[%s969 + $0x81] sm:$0xff]
      %v1014 = vld [vmem:[%s969 + $0x91] sm:$0xff]
      %v1015 = vld [vmem:[%s969 + $0x99] sm:$0xff]
      %v1016 = vld [vmem:[%s969 + $0xa9] sm:$0xff]
      %v1017 = vld [vmem:[%s969 + $0xb1] sm:$0xff]
      %v1018 = vld [vmem:[%s969 + $0xc1] sm:$0xff]
      %v1019 = vld [vmem:[%s969 + $0xc9] sm:$0xff]
      %v1020 = vld [vmem:[%s969 + $0xd9] sm:$0xff]
      %v1021 = vld [vmem:[%s969 + $0xe1] sm:$0xff]
      %v1022 = vld [vmem:[%s969 + $0xf1] sm:$0xff]
      %v1023 = vld [vmem:[%s969 + $0xf9] sm:$0xff]
      %v1024 = vld [vmem:[%s969 + $0x109] sm:$0xff]
      %v1025 = vld [vmem:[%s969 + $0x111] sm:$0xff]
      %v1026 = vld [vmem:[%s969 + $0x121] sm:$0xff]
      %v1027 = vld [vmem:[%s969 + $0x129] sm:$0xff]
      %v1028 = vld [vmem:[%s969 + $0x139] sm:$0xff]
      %v1029 = vld [vmem:[%s969 + $0x141] sm:$0xff]
      %v1030 = vld [vmem:[%s969 + $0x151] sm:$0xff]
      %v1031 = vld [vmem:[%s969 + $0x159] sm:$0xff]
      %v1032 = vld [vmem:[%s969 + $0x169] sm:$0xff]
      %v1033 = vld [vmem:[%s969 + $0x171] sm:$0xff]
      %v1034 = vld [vmem:[%s969 + $0x2] sm:$0xff]
      %v1035 = vld [vmem:[%s969 + $0xa] sm:$0xff]
      %v1036 = vld [vmem:[%s969 + $0x1a] sm:$0xff]
      %v1037 = vld [vmem:[%s969 + $0x22] sm:$0xff]
      %v1038 = vld [vmem:[%s969 + $0x32] sm:$0xff]
      %v1039 = vld [vmem:[%s969 + $0x3a] sm:$0xff]
      %v1040 = vld [vmem:[%s969 + $0x4a] sm:$0xff]
      %v1041 = vld [vmem:[%s969 + $0x52] sm:$0xff]
      %v1042 = vld [vmem:[%s969 + $0x62] sm:$0xff]
      %v1043 = vld [vmem:[%s969 + $0x6a] sm:$0xff]
      %v1044 = vld [vmem:[%s969 + $0x7a] sm:$0xff]
      %v1045 = vld [vmem:[%s969 + $0x82] sm:$0xff]
      %v1046 = vld [vmem:[%s969 + $0x92] sm:$0xff]
      %v1047 = vld [vmem:[%s969 + $0x9a] sm:$0xff]
      %v1048 = vld [vmem:[%s969 + $0xaa] sm:$0xff]
      %v1049 = vld [vmem:[%s969 + $0xb2] sm:$0xff]
      %v1050 = vld [vmem:[%s969 + $0xc2] sm:$0xff]
      %v1051 = vld [vmem:[%s969 + $0xca] sm:$0xff]
      %v1052 = vld [vmem:[%s969 + $0xda] sm:$0xff]
      %v1053 = vld [vmem:[%s969 + $0xe2] sm:$0xff]
      %v1054 = vld [vmem:[%s969 + $0xf2] sm:$0xff]
      %v1055 = vld [vmem:[%s969 + $0xfa] sm:$0xff]
      %v1056 = vld [vmem:[%s969 + $0x10a] sm:$0xff]
      %v1057 = vld [vmem:[%s969 + $0x112] sm:$0xff]
      %v1058 = vld [vmem:[%s969 + $0x122] sm:$0xff]
      %v1059 = vld [vmem:[%s969 + $0x12a] sm:$0xff]
      %v1060 = vld [vmem:[%s969 + $0x13a] sm:$0xff]
      %v1061 = vld [vmem:[%s969 + $0x142] sm:$0xff]
      %v1062 = vld [vmem:[%s969 + $0x152] sm:$0xff]
      %v1063 = vld [vmem:[%s969 + $0x15a] sm:$0xff]
      %v1064 = vld [vmem:[%s969 + $0x16a] sm:$0xff]
      %v1065 = vld [vmem:[%s969 + $0x172] sm:$0xff]
      %1098 = vrot.lane.b32.xlu0 %v809, 32
      %v1099 = vpop.permute.xlu0 %1098
      %1100 = vrot.lane.b32.xlu0 %v810, 32
      %v1101 = vpop.permute.xlu0 %1100
      %1102 = vrot.lane.b32.xlu0 %v811, 32
      %v1103 = vpop.permute.xlu0 %1102
      %1104 = vrot.lane.b32.xlu0 %v812, 32
      %v1105 = vpop.permute.xlu0 %1104
      %1106 = vrot.lane.b32.xlu0 %v813, 32
      %v1107 = vpop.permute.xlu0 %1106
      %1108 = vrot.lane.b32.xlu0 %v814, 32
      %v1109 = vpop.permute.xlu0 %1108
      %1110 = vrot.lane.b32.xlu0 %v815, 32
      %v1111 = vpop.permute.xlu0 %1110
      %1112 = vrot.lane.b32.xlu0 %v816, 32
      %v1113 = vpop.permute.xlu0 %1112
      %1114 = vrot.lane.b32.xlu0 %v817, 32
      %v1115 = vpop.permute.xlu0 %1114
      %1116 = vrot.lane.b32.xlu0 %v818, 32
      %v1117 = vpop.permute.xlu0 %1116
      %1118 = vrot.lane.b32.xlu0 %v819, 32
      %v1119 = vpop.permute.xlu0 %1118
      %1120 = vrot.lane.b32.xlu0 %v820, 32
      %v1121 = vpop.permute.xlu0 %1120
      %1122 = vrot.lane.b32.xlu0 %v821, 32
      %v1123 = vpop.permute.xlu0 %1122
      %1124 = vrot.lane.b32.xlu0 %v822, 32
      %v1125 = vpop.permute.xlu0 %1124
      %1126 = vrot.lane.b32.xlu0 %v823, 32
      %v1127 = vpop.permute.xlu0 %1126
      %1128 = vrot.lane.b32.xlu0 %v824, 32
      %v1129 = vpop.permute.xlu0 %1128
      %1130 = vrot.lane.b32.xlu0 %v825, 32
      %v1131 = vpop.permute.xlu0 %1130
      %1132 = vrot.lane.b32.xlu0 %v826, 32
      %v1133 = vpop.permute.xlu0 %1132
      %1134 = vrot.lane.b32.xlu0 %v827, 32
      %v1135 = vpop.permute.xlu0 %1134
      %1136 = vrot.lane.b32.xlu0 %v828, 32
      %v1137 = vpop.permute.xlu0 %1136
      %1138 = vrot.lane.b32.xlu0 %v829, 32
      %v1139 = vpop.permute.xlu0 %1138
      %1140 = vrot.lane.b32.xlu0 %v830, 32
      %v1141 = vpop.permute.xlu0 %1140
      %1142 = vrot.lane.b32.xlu0 %v831, 32
      %v1143 = vpop.permute.xlu0 %1142
      %1144 = vrot.lane.b32.xlu0 %v832, 32
      %v1145 = vpop.permute.xlu0 %1144
      %1146 = vrot.lane.b32.xlu0 %v833, 32
      %v1147 = vpop.permute.xlu0 %1146
      %1148 = vrot.lane.b32.xlu0 %v834, 32
      %v1149 = vpop.permute.xlu0 %1148
      %1150 = vrot.lane.b32.xlu0 %v835, 32
      %v1151 = vpop.permute.xlu0 %1150
      %1152 = vrot.lane.b32.xlu0 %v836, 32
      %v1153 = vpop.permute.xlu0 %1152
      %1154 = vrot.lane.b32.xlu0 %v837, 32
      %v1155 = vpop.permute.xlu0 %1154
      %1156 = vrot.lane.b32.xlu0 %v838, 32
      %v1157 = vpop.permute.xlu0 %1156
      %1158 = vrot.lane.b32.xlu0 %v839, 32
      %v1159 = vpop.permute.xlu0 %1158
      %1160 = vrot.lane.b32.xlu0 %v840, 32
      %v1161 = vpop.permute.xlu0 %1160
      %1226 = vrot.lane.b32.xlu0 %v841, 64
      %v1227 = vpop.permute.xlu0 %1226
      %1228 = vrot.lane.b32.xlu0 %v842, 64
      %v1229 = vpop.permute.xlu0 %1228
      %1230 = vrot.lane.b32.xlu0 %v843, 64
      %v1231 = vpop.permute.xlu0 %1230
      %1232 = vrot.lane.b32.xlu0 %v844, 64
      %v1233 = vpop.permute.xlu0 %1232
      %1234 = vrot.lane.b32.xlu0 %v845, 64
      %v1235 = vpop.permute.xlu0 %1234
      %1236 = vrot.lane.b32.xlu0 %v846, 64
      %v1237 = vpop.permute.xlu0 %1236
      %1238 = vrot.lane.b32.xlu0 %v847, 64
      %v1239 = vpop.permute.xlu0 %1238
      %1240 = vrot.lane.b32.xlu0 %v848, 64
      %v1241 = vpop.permute.xlu0 %1240
      %1242 = vrot.lane.b32.xlu0 %v849, 64
      %v1243 = vpop.permute.xlu0 %1242
      %1244 = vrot.lane.b32.xlu0 %v850, 64
      %v1245 = vpop.permute.xlu0 %1244
      %1246 = vrot.lane.b32.xlu0 %v851, 64
      %v1247 = vpop.permute.xlu0 %1246
      %1248 = vrot.lane.b32.xlu0 %v852, 64
      %v1249 = vpop.permute.xlu0 %1248
      %1250 = vrot.lane.b32.xlu0 %v853, 64
      %v1251 = vpop.permute.xlu0 %1250
      %1252 = vrot.lane.b32.xlu0 %v854, 64
      %v1253 = vpop.permute.xlu0 %1252
      %1254 = vrot.lane.b32.xlu0 %v855, 64
      %v1255 = vpop.permute.xlu0 %1254
      %1256 = vrot.lane.b32.xlu0 %v856, 64
      %v1257 = vpop.permute.xlu0 %1256
      %1258 = vrot.lane.b32.xlu0 %v857, 64
      %v1259 = vpop.permute.xlu0 %1258
      %1260 = vrot.lane.b32.xlu0 %v858, 64
      %v1261 = vpop.permute.xlu0 %1260
      %1262 = vrot.lane.b32.xlu0 %v859, 64
      %v1263 = vpop.permute.xlu0 %1262
      %1264 = vrot.lane.b32.xlu0 %v860, 64
      %v1265 = vpop.permute.xlu0 %1264
      %1266 = vrot.lane.b32.xlu0 %v861, 64
      %v1267 = vpop.permute.xlu0 %1266
      %1268 = vrot.lane.b32.xlu0 %v862, 64
      %v1269 = vpop.permute.xlu0 %1268
      %1270 = vrot.lane.b32.xlu0 %v863, 64
      %v1271 = vpop.permute.xlu0 %1270
      %1272 = vrot.lane.b32.xlu0 %v864, 64
      %v1273 = vpop.permute.xlu0 %1272
      %1274 = vrot.lane.b32.xlu0 %v865, 64
      %v1275 = vpop.permute.xlu0 %1274
      %1276 = vrot.lane.b32.xlu0 %v866, 64
      %v1277 = vpop.permute.xlu0 %1276
      %1278 = vrot.lane.b32.xlu0 %v867, 64
      %v1279 = vpop.permute.xlu0 %1278
      %1280 = vrot.lane.b32.xlu0 %v868, 64
      %v1281 = vpop.permute.xlu0 %1280
      %1282 = vrot.lane.b32.xlu0 %v869, 64
      %v1283 = vpop.permute.xlu0 %1282
      %1284 = vrot.lane.b32.xlu0 %v870, 64
      %v1285 = vpop.permute.xlu0 %1284
      %1286 = vrot.lane.b32.xlu0 %v871, 64
      %v1287 = vpop.permute.xlu0 %1286
      %1288 = vrot.lane.b32.xlu0 %v872, 64
      %v1289 = vpop.permute.xlu0 %1288
      %1354 = vrot.lane.b32.xlu0 %v873, 96
      %v1355 = vpop.permute.xlu0 %1354
      %1356 = vrot.lane.b32.xlu0 %v874, 96
      %v1357 = vpop.permute.xlu0 %1356
      %1358 = vrot.lane.b32.xlu0 %v875, 96
      %v1359 = vpop.permute.xlu0 %1358
      %1360 = vrot.lane.b32.xlu0 %v876, 96
      %v1361 = vpop.permute.xlu0 %1360
      %1362 = vrot.lane.b32.xlu0 %v877, 96
      %v1363 = vpop.permute.xlu0 %1362
      %1364 = vrot.lane.b32.xlu0 %v878, 96
      %v1365 = vpop.permute.xlu0 %1364
      %1366 = vrot.lane.b32.xlu0 %v879, 96
      %v1367 = vpop.permute.xlu0 %1366
      %1368 = vrot.lane.b32.xlu0 %v880, 96
      %v1369 = vpop.permute.xlu0 %1368
      %1370 = vrot.lane.b32.xlu0 %v881, 96
      %v1371 = vpop.permute.xlu0 %1370
      %1372 = vrot.lane.b32.xlu0 %v882, 96
      %v1373 = vpop.permute.xlu0 %1372
      %1374 = vrot.lane.b32.xlu0 %v883, 96
      %v1375 = vpop.permute.xlu0 %1374
      %1376 = vrot.lane.b32.xlu0 %v884, 96
      %v1377 = vpop.permute.xlu0 %1376
      %1378 = vrot.lane.b32.xlu0 %v885, 96
      %v1379 = vpop.permute.xlu0 %1378
      %1380 = vrot.lane.b32.xlu0 %v886, 96
      %v1381 = vpop.permute.xlu0 %1380
      %1382 = vrot.lane.b32.xlu0 %v887, 96
      %v1383 = vpop.permute.xlu0 %1382
      %1384 = vrot.lane.b32.xlu0 %v888, 96
      %v1385 = vpop.permute.xlu0 %1384
      %1386 = vrot.lane.b32.xlu0 %v889, 96
      %v1387 = vpop.permute.xlu0 %1386
      %1388 = vrot.lane.b32.xlu0 %v890, 96
      %v1389 = vpop.permute.xlu0 %1388
      %1390 = vrot.lane.b32.xlu0 %v891, 96
      %v1391 = vpop.permute.xlu0 %1390
      %1392 = vrot.lane.b32.xlu0 %v892, 96
      %v1393 = vpop.permute.xlu0 %1392
      %1394 = vrot.lane.b32.xlu0 %v893, 96
      %v1395 = vpop.permute.xlu0 %1394
      %1396 = vrot.lane.b32.xlu0 %v894, 96
      %v1397 = vpop.permute.xlu0 %1396
      %1398 = vrot.lane.b32.xlu0 %v895, 96
      %v1399 = vpop.permute.xlu0 %1398
      %1400 = vrot.lane.b32.xlu0 %v896, 96
      %v1401 = vpop.permute.xlu0 %1400
      %1402 = vrot.lane.b32.xlu0 %v897, 96
      %v1403 = vpop.permute.xlu0 %1402
      %1404 = vrot.lane.b32.xlu0 %v898, 96
      %v1405 = vpop.permute.xlu0 %1404
      %1406 = vrot.lane.b32.xlu0 %v899, 96
      %v1407 = vpop.permute.xlu0 %1406
      %1408 = vrot.lane.b32.xlu0 %v900, 96
      %v1409 = vpop.permute.xlu0 %1408
      %1410 = vrot.lane.b32.xlu0 %v901, 96
      %v1411 = vpop.permute.xlu0 %1410
      %1412 = vrot.lane.b32.xlu0 %v902, 96
      %v1413 = vpop.permute.xlu0 %1412
      %1414 = vrot.lane.b32.xlu0 %v903, 96
      %v1415 = vpop.permute.xlu0 %1414
      %1416 = vrot.lane.b32.xlu0 %v904, 96
      %v1417 = vpop.permute.xlu0 %1416
      %1482 = vrot.lane.b32.xlu0 %v937, 32
      %v1483 = vpop.permute.xlu0 %1482
      %1484 = vrot.lane.b32.xlu0 %v938, 32
      %v1485 = vpop.permute.xlu0 %1484
      %1486 = vrot.lane.b32.xlu0 %v939, 32
      %v1487 = vpop.permute.xlu0 %1486
      %1488 = vrot.lane.b32.xlu0 %v940, 32
      %v1489 = vpop.permute.xlu0 %1488
      %1490 = vrot.lane.b32.xlu0 %v941, 32
      %v1491 = vpop.permute.xlu0 %1490
      %1492 = vrot.lane.b32.xlu0 %v942, 32
      %v1493 = vpop.permute.xlu0 %1492
      %1494 = vrot.lane.b32.xlu0 %v943, 32
      %v1495 = vpop.permute.xlu0 %1494
      %1496 = vrot.lane.b32.xlu0 %v944, 32
      %v1497 = vpop.permute.xlu0 %1496
      %1498 = vrot.lane.b32.xlu0 %v945, 32
      %v1499 = vpop.permute.xlu0 %1498
      %1500 = vrot.lane.b32.xlu0 %v946, 32
      %v1501 = vpop.permute.xlu0 %1500
      %1502 = vrot.lane.b32.xlu0 %v947, 32
      %v1503 = vpop.permute.xlu0 %1502
      %1504 = vrot.lane.b32.xlu0 %v948, 32
      %v1505 = vpop.permute.xlu0 %1504
      %1506 = vrot.lane.b32.xlu0 %v949, 32
      %v1507 = vpop.permute.xlu0 %1506
      %1508 = vrot.lane.b32.xlu0 %v950, 32
      %v1509 = vpop.permute.xlu0 %1508
      %1510 = vrot.lane.b32.xlu0 %v951, 32
      %v1511 = vpop.permute.xlu0 %1510
      %1512 = vrot.lane.b32.xlu0 %v952, 32
      %v1513 = vpop.permute.xlu0 %1512
      %1514 = vrot.lane.b32.xlu0 %v953, 32
      %v1515 = vpop.permute.xlu0 %1514
      %1516 = vrot.lane.b32.xlu0 %v954, 32
      %v1517 = vpop.permute.xlu0 %1516
      %1518 = vrot.lane.b32.xlu0 %v955, 32
      %v1519 = vpop.permute.xlu0 %1518
      %1520 = vrot.lane.b32.xlu0 %v956, 32
      %v1521 = vpop.permute.xlu0 %1520
      %1522 = vrot.lane.b32.xlu0 %v957, 32
      %v1523 = vpop.permute.xlu0 %1522
      %1524 = vrot.lane.b32.xlu0 %v958, 32
      %v1525 = vpop.permute.xlu0 %1524
      %1526 = vrot.lane.b32.xlu0 %v959, 32
      %v1527 = vpop.permute.xlu0 %1526
      %1528 = vrot.lane.b32.xlu0 %v960, 32
      %v1529 = vpop.permute.xlu0 %1528
      %1530 = vrot.lane.b32.xlu0 %v961, 32
      %v1531 = vpop.permute.xlu0 %1530
      %1532 = vrot.lane.b32.xlu0 %v962, 32
      %v1533 = vpop.permute.xlu0 %1532
      %1534 = vrot.lane.b32.xlu0 %v963, 32
      %v1535 = vpop.permute.xlu0 %1534
      %1536 = vrot.lane.b32.xlu0 %v964, 32
      %v1537 = vpop.permute.xlu0 %1536
      %1538 = vrot.lane.b32.xlu0 %v965, 32
      %v1539 = vpop.permute.xlu0 %1538
      %1540 = vrot.lane.b32.xlu0 %v966, 32
      %v1541 = vpop.permute.xlu0 %1540
      %1542 = vrot.lane.b32.xlu0 %v967, 32
      %v1543 = vpop.permute.xlu0 %1542
      %1544 = vrot.lane.b32.xlu0 %v968, 32
      %v1545 = vpop.permute.xlu0 %1544
      %1610 = vrot.lane.b32.xlu0 %v970, 64
      %v1611 = vpop.permute.xlu0 %1610
      %1612 = vrot.lane.b32.xlu0 %v971, 64
      %v1613 = vpop.permute.xlu0 %1612
      %1614 = vrot.lane.b32.xlu0 %v972, 64
      %v1615 = vpop.permute.xlu0 %1614
      %1616 = vrot.lane.b32.xlu0 %v973, 64
      %v1617 = vpop.permute.xlu0 %1616
      %1618 = vrot.lane.b32.xlu0 %v974, 64
      %v1619 = vpop.permute.xlu0 %1618
      %1620 = vrot.lane.b32.xlu0 %v975, 64
      %v1621 = vpop.permute.xlu0 %1620
      %1622 = vrot.lane.b32.xlu0 %v976, 64
      %v1623 = vpop.permute.xlu0 %1622
      %1624 = vrot.lane.b32.xlu0 %v977, 64
      %v1625 = vpop.permute.xlu0 %1624
      %1626 = vrot.lane.b32.xlu0 %v978, 64
      %v1627 = vpop.permute.xlu0 %1626
      %1628 = vrot.lane.b32.xlu0 %v979, 64
      %v1629 = vpop.permute.xlu0 %1628
      %1630 = vrot.lane.b32.xlu0 %v980, 64
      %v1631 = vpop.permute.xlu0 %1630
      %1632 = vrot.lane.b32.xlu0 %v981, 64
      %v1633 = vpop.permute.xlu0 %1632
      %1634 = vrot.lane.b32.xlu0 %v982, 64
      %v1635 = vpop.permute.xlu0 %1634
      %1636 = vrot.lane.b32.xlu0 %v983, 64
      %v1637 = vpop.permute.xlu0 %1636
      %1638 = vrot.lane.b32.xlu0 %v984, 64
      %v1639 = vpop.permute.xlu0 %1638
      %1640 = vrot.lane.b32.xlu0 %v985, 64
      %v1641 = vpop.permute.xlu0 %1640
      %1642 = vrot.lane.b32.xlu0 %v986, 64
      %v1643 = vpop.permute.xlu0 %1642
      %1644 = vrot.lane.b32.xlu0 %v987, 64
      %v1645 = vpop.permute.xlu0 %1644
      %1646 = vrot.lane.b32.xlu0 %v988, 64
      %v1647 = vpop.permute.xlu0 %1646
      %1648 = vrot.lane.b32.xlu0 %v989, 64
      %v1649 = vpop.permute.xlu0 %1648
      %1650 = vrot.lane.b32.xlu0 %v990, 64
      %v1651 = vpop.permute.xlu0 %1650
      %1652 = vrot.lane.b32.xlu0 %v991, 64
      %v1653 = vpop.permute.xlu0 %1652
      %1654 = vrot.lane.b32.xlu0 %v992, 64
      %v1655 = vpop.permute.xlu0 %1654
      %1656 = vrot.lane.b32.xlu0 %v993, 64
      %v1657 = vpop.permute.xlu0 %1656
      %1658 = vrot.lane.b32.xlu0 %v994, 64
      %v1659 = vpop.permute.xlu0 %1658
      %1660 = vrot.lane.b32.xlu0 %v995, 64
      %v1661 = vpop.permute.xlu0 %1660
      %1662 = vrot.lane.b32.xlu0 %v996, 64
      %v1663 = vpop.permute.xlu0 %1662
      %1664 = vrot.lane.b32.xlu0 %v997, 64
      %v1665 = vpop.permute.xlu0 %1664
      %1666 = vrot.lane.b32.xlu0 %v998, 64
      %v1667 = vpop.permute.xlu0 %1666
      %1668 = vrot.lane.b32.xlu0 %v999, 64
      %v1669 = vpop.permute.xlu0 %1668
      %1670 = vrot.lane.b32.xlu0 %v1000, 64
      %v1671 = vpop.permute.xlu0 %1670
      %1672 = vrot.lane.b32.xlu0 %v1001, 64
      %v1673 = vpop.permute.xlu0 %1672
      %1738 = vrot.lane.b32.xlu0 %v1002, 96
      %v1739 = vpop.permute.xlu0 %1738
      %1740 = vrot.lane.b32.xlu0 %v1003, 96
      %v1741 = vpop.permute.xlu0 %1740
      %1742 = vrot.lane.b32.xlu0 %v1004, 96
      %v1743 = vpop.permute.xlu0 %1742
      %1744 = vrot.lane.b32.xlu0 %v1005, 96
      %v1745 = vpop.permute.xlu0 %1744
      %1746 = vrot.lane.b32.xlu0 %v1006, 96
      %v1747 = vpop.permute.xlu0 %1746
      %1748 = vrot.lane.b32.xlu0 %v1007, 96
      %v1749 = vpop.permute.xlu0 %1748
      %1750 = vrot.lane.b32.xlu0 %v1008, 96
      %v1751 = vpop.permute.xlu0 %1750
      %1752 = vrot.lane.b32.xlu0 %v1009, 96
      %v1753 = vpop.permute.xlu0 %1752
      %1754 = vrot.lane.b32.xlu0 %v1010, 96
      %v1755 = vpop.permute.xlu0 %1754
      %1756 = vrot.lane.b32.xlu0 %v1011, 96
      %v1757 = vpop.permute.xlu0 %1756
      %1758 = vrot.lane.b32.xlu0 %v1012, 96
      %v1759 = vpop.permute.xlu0 %1758
      %1760 = vrot.lane.b32.xlu0 %v1013, 96
      %v1761 = vpop.permute.xlu0 %1760
      %1762 = vrot.lane.b32.xlu0 %v1014, 96
      %v1763 = vpop.permute.xlu0 %1762
      %1764 = vrot.lane.b32.xlu0 %v1015, 96
      %v1765 = vpop.permute.xlu0 %1764
      %1766 = vrot.lane.b32.xlu0 %v1016, 96
      %v1767 = vpop.permute.xlu0 %1766
      %1768 = vrot.lane.b32.xlu0 %v1017, 96
      %v1769 = vpop.permute.xlu0 %1768
      %1770 = vrot.lane.b32.xlu0 %v1018, 96
      %v1771 = vpop.permute.xlu0 %1770
      %1772 = vrot.lane.b32.xlu0 %v1019, 96
      %v1773 = vpop.permute.xlu0 %1772
      %1774 = vrot.lane.b32.xlu0 %v1020, 96
      %v1775 = vpop.permute.xlu0 %1774
      %1776 = vrot.lane.b32.xlu0 %v1021, 96
      %v1777 = vpop.permute.xlu0 %1776
      %1778 = vrot.lane.b32.xlu0 %v1022, 96
      %v1779 = vpop.permute.xlu0 %1778
      %1780 = vrot.lane.b32.xlu0 %v1023, 96
      %v1781 = vpop.permute.xlu0 %1780
      %1782 = vrot.lane.b32.xlu0 %v1024, 96
      %v1783 = vpop.permute.xlu0 %1782
      %1784 = vrot.lane.b32.xlu0 %v1025, 96
      %v1785 = vpop.permute.xlu0 %1784
      %1786 = vrot.lane.b32.xlu0 %v1026, 96
      %v1787 = vpop.permute.xlu0 %1786
      %1788 = vrot.lane.b32.xlu0 %v1027, 96
      %v1789 = vpop.permute.xlu0 %1788
      %1790 = vrot.lane.b32.xlu0 %v1028, 96
      %v1791 = vpop.permute.xlu0 %1790
      %1792 = vrot.lane.b32.xlu0 %v1029, 96
      %v1793 = vpop.permute.xlu0 %1792
      %1794 = vrot.lane.b32.xlu0 %v1030, 96
      %v1795 = vpop.permute.xlu0 %1794
      %1796 = vrot.lane.b32.xlu0 %v1031, 96
      %v1797 = vpop.permute.xlu0 %1796
      %1798 = vrot.lane.b32.xlu0 %v1032, 96
      %v1799 = vpop.permute.xlu0 %1798
      %1800 = vrot.lane.b32.xlu0 %v1033, 96
      %v1801 = vpop.permute.xlu0 %1800
      %v1834 = vsel %vm688, %v777, %v1099
      %v1835 = vsel %vm688, %v778, %v1101
      %v1836 = vsel %vm688, %v779, %v1103
      %v1837 = vsel %vm688, %v780, %v1105
      %v1838 = vsel %vm688, %v781, %v1107
      %v1839 = vsel %vm688, %v782, %v1109
      %v1840 = vsel %vm688, %v783, %v1111
      %v1841 = vsel %vm688, %v784, %v1113
      %v1842 = vsel %vm688, %v785, %v1115
      %v1843 = vsel %vm688, %v786, %v1117
      %v1844 = vsel %vm688, %v787, %v1119
      %v1845 = vsel %vm688, %v788, %v1121
      %v1846 = vsel %vm688, %v789, %v1123
      %v1847 = vsel %vm688, %v790, %v1125
      %v1848 = vsel %vm688, %v791, %v1127
      %v1849 = vsel %vm688, %v792, %v1129
      %v1850 = vsel %vm688, %v793, %v1131
      %v1851 = vsel %vm688, %v794, %v1133
      %v1852 = vsel %vm688, %v795, %v1135
      %v1853 = vsel %vm688, %v796, %v1137
      %v1854 = vsel %vm688, %v797, %v1139
      %v1855 = vsel %vm688, %v798, %v1141
      %v1856 = vsel %vm688, %v799, %v1143
      %v1857 = vsel %vm688, %v800, %v1145
      %v1858 = vsel %vm688, %v801, %v1147
      %v1859 = vsel %vm688, %v802, %v1149
      %v1860 = vsel %vm688, %v803, %v1151
      %v1861 = vsel %vm688, %v804, %v1153
      %v1862 = vsel %vm688, %v805, %v1155
      %v1863 = vsel %vm688, %v806, %v1157
      %v1864 = vsel %vm688, %v807, %v1159
      %v1865 = vsel %vm688, %v808, %v1161
      %vm1866 = vcmask 523264
      %v1867 = vsel %vm1866, %v1834, %v1227
      %v1868 = vsel %vm1866, %v1835, %v1229
      %v1869 = vsel %vm1866, %v1836, %v1231
      %v1870 = vsel %vm1866, %v1837, %v1233
      %v1871 = vsel %vm1866, %v1838, %v1235
      %v1872 = vsel %vm1866, %v1839, %v1237
      %v1873 = vsel %vm1866, %v1840, %v1239
      %v1874 = vsel %vm1866, %v1841, %v1241
      %v1875 = vsel %vm1866, %v1842, %v1243
      %v1876 = vsel %vm1866, %v1843, %v1245
      %v1877 = vsel %vm1866, %v1844, %v1247
      %v1878 = vsel %vm1866, %v1845, %v1249
      %v1879 = vsel %vm1866, %v1846, %v1251
      %v1880 = vsel %vm1866, %v1847, %v1253
      %v1881 = vsel %vm1866, %v1848, %v1255
      %v1882 = vsel %vm1866, %v1849, %v1257
      %v1883 = vsel %vm1866, %v1850, %v1259
      %v1884 = vsel %vm1866, %v1851, %v1261
      %v1885 = vsel %vm1866, %v1852, %v1263
      %v1886 = vsel %vm1866, %v1853, %v1265
      %v1887 = vsel %vm1866, %v1854, %v1267
      %v1888 = vsel %vm1866, %v1855, %v1269
      %v1889 = vsel %vm1866, %v1856, %v1271
      %v1890 = vsel %vm1866, %v1857, %v1273
      %v1891 = vsel %vm1866, %v1858, %v1275
      %v1892 = vsel %vm1866, %v1859, %v1277
      %v1893 = vsel %vm1866, %v1860, %v1279
      %v1894 = vsel %vm1866, %v1861, %v1281
      %v1895 = vsel %vm1866, %v1862, %v1283
      %v1896 = vsel %vm1866, %v1863, %v1285
      %v1897 = vsel %vm1866, %v1864, %v1287
      %v1898 = vsel %vm1866, %v1865, %v1289
      %vm1899 = vcmask 785408
      %v1900 = vsel %vm1899, %v1867, %v1355
      %v1901 = vsel %vm1899, %v1868, %v1357
      %v1902 = vsel %vm1899, %v1869, %v1359
      %v1903 = vsel %vm1899, %v1870, %v1361
      %v1904 = vsel %vm1899, %v1871, %v1363
      %v1905 = vsel %vm1899, %v1872, %v1365
      %v1906 = vsel %vm1899, %v1873, %v1367
      %v1907 = vsel %vm1899, %v1874, %v1369
      %v1908 = vsel %vm1899, %v1875, %v1371
      %v1909 = vsel %vm1899, %v1876, %v1373
      %v1910 = vsel %vm1899, %v1877, %v1375
      %v1911 = vsel %vm1899, %v1878, %v1377
      %v1912 = vsel %vm1899, %v1879, %v1379
      %v1913 = vsel %vm1899, %v1880, %v1381
      %v1914 = vsel %vm1899, %v1881, %v1383
      %v1915 = vsel %vm1899, %v1882, %v1385
      %v1916 = vsel %vm1899, %v1883, %v1387
      %v1917 = vsel %vm1899, %v1884, %v1389
      %v1918 = vsel %vm1899, %v1885, %v1391
      %v1919 = vsel %vm1899, %v1886, %v1393
      %v1920 = vsel %vm1899, %v1887, %v1395
      %v1921 = vsel %vm1899, %v1888, %v1397
      %v1922 = vsel %vm1899, %v1889, %v1399
      %v1923 = vsel %vm1899, %v1890, %v1401
      %v1924 = vsel %vm1899, %v1891, %v1403
      %v1925 = vsel %vm1899, %v1892, %v1405
      %v1926 = vsel %vm1899, %v1893, %v1407
      %v1927 = vsel %vm1899, %v1894, %v1409
      %v1928 = vsel %vm1899, %v1895, %v1411
      %v1929 = vsel %vm1899, %v1896, %v1413
      %v1930 = vsel %vm1899, %v1897, %v1415
      %v1931 = vsel %vm1899, %v1898, %v1417
      %v1932 = vsel %vm688, %v905, %v1483
      %v1933 = vsel %vm688, %v906, %v1485
      %v1934 = vsel %vm688, %v907, %v1487
      %v1935 = vsel %vm688, %v908, %v1489
      %v1936 = vsel %vm688, %v909, %v1491
      %v1937 = vsel %vm688, %v910, %v1493
      %v1938 = vsel %vm688, %v911, %v1495
      %v1939 = vsel %vm688, %v912, %v1497
      %v1940 = vsel %vm688, %v913, %v1499
      %v1941 = vsel %vm688, %v914, %v1501
      %v1942 = vsel %vm688, %v915, %v1503
      %v1943 = vsel %vm688, %v916, %v1505
      %v1944 = vsel %vm688, %v917, %v1507
      %v1945 = vsel %vm688, %v918, %v1509
      %v1946 = vsel %vm688, %v919, %v1511
      %v1947 = vsel %vm688, %v920, %v1513
      %v1948 = vsel %vm688, %v921, %v1515
      %v1949 = vsel %vm688, %v922, %v1517
      %v1950 = vsel %vm688, %v923, %v1519
      %v1951 = vsel %vm688, %v924, %v1521
      %v1952 = vsel %vm688, %v925, %v1523
      %v1953 = vsel %vm688, %v926, %v1525
      %v1954 = vsel %vm688, %v927, %v1527
      %v1955 = vsel %vm688, %v928, %v1529
      %v1956 = vsel %vm688, %v929, %v1531
      %v1957 = vsel %vm688, %v930, %v1533
      %v1958 = vsel %vm688, %v931, %v1535
      %v1959 = vsel %vm688, %v932, %v1537
      %v1960 = vsel %vm688, %v933, %v1539
      %v1961 = vsel %vm688, %v934, %v1541
      %v1962 = vsel %vm688, %v935, %v1543
      %v1963 = vsel %vm688, %v936, %v1545
      %v1964 = vsel %vm1866, %v1932, %v1611
      %v1965 = vsel %vm1866, %v1933, %v1613
      %v1966 = vsel %vm1866, %v1934, %v1615
      %v1967 = vsel %vm1866, %v1935, %v1617
      %v1968 = vsel %vm1866, %v1936, %v1619
      %v1969 = vsel %vm1866, %v1937, %v1621
      %v1970 = vsel %vm1866, %v1938, %v1623
      %v1971 = vsel %vm1866, %v1939, %v1625
      %v1972 = vsel %vm1866, %v1940, %v1627
      %v1973 = vsel %vm1866, %v1941, %v1629
      %v1974 = vsel %vm1866, %v1942, %v1631
      %v1975 = vsel %vm1866, %v1943, %v1633
      %v1976 = vsel %vm1866, %v1944, %v1635
      %v1977 = vsel %vm1866, %v1945, %v1637
      %v1978 = vsel %vm1866, %v1946, %v1639
      %v1979 = vsel %vm1866, %v1947, %v1641
      %v1980 = vsel %vm1866, %v1948, %v1643
      %v1981 = vsel %vm1866, %v1949, %v1645
      %v1982 = vsel %vm1866, %v1950, %v1647
      %v1983 = vsel %vm1866, %v1951, %v1649
      %v1984 = vsel %vm1866, %v1952, %v1651
      %v1985 = vsel %vm1866, %v1953, %v1653
      %v1986 = vsel %vm1866, %v1954, %v1655
      %v1987 = vsel %vm1866, %v1955, %v1657
      %v1988 = vsel %vm1866, %v1956, %v1659
      %v1989 = vsel %vm1866, %v1957, %v1661
      %v1990 = vsel %vm1866, %v1958, %v1663
      %v1991 = vsel %vm1866, %v1959, %v1665
      %v1992 = vsel %vm1866, %v1960, %v1667
      %v1993 = vsel %vm1866, %v1961, %v1669
      %v1994 = vsel %vm1866, %v1962, %v1671
      %v1995 = vsel %vm1866, %v1963, %v1673
      %v1996 = vsel %vm1899, %v1964, %v1739
      %v1997 = vsel %vm1899, %v1965, %v1741
      %v1998 = vsel %vm1899, %v1966, %v1743
      %v1999 = vsel %vm1899, %v1967, %v1745
      %v2000 = vsel %vm1899, %v1968, %v1747
      %v2001 = vsel %vm1899, %v1969, %v1749
      %v2002 = vsel %vm1899, %v1970, %v1751
      %v2003 = vsel %vm1899, %v1971, %v1753
      %v2004 = vsel %vm1899, %v1972, %v1755
      %v2005 = vsel %vm1899, %v1973, %v1757
      %v2006 = vsel %vm1899, %v1974, %v1759
      %v2007 = vsel %vm1899, %v1975, %v1761
      %v2008 = vsel %vm1899, %v1976, %v1763
      %v2009 = vsel %vm1899, %v1977, %v1765
      %v2010 = vsel %vm1899, %v1978, %v1767
      %v2011 = vsel %vm1899, %v1979, %v1769
      %v2012 = vsel %vm1899, %v1980, %v1771
      %v2013 = vsel %vm1899, %v1981, %v1773
      %v2014 = vsel %vm1899, %v1982, %v1775
      %v2015 = vsel %vm1899, %v1983, %v1777
      %v2016 = vsel %vm1899, %v1984, %v1779
      %v2017 = vsel %vm1899, %v1985, %v1781
      %v2018 = vsel %vm1899, %v1986, %v1783
      %v2019 = vsel %vm1899, %v1987, %v1785
      %v2020 = vsel %vm1899, %v1988, %v1787
      %v2021 = vsel %vm1899, %v1989, %v1789
      %v2022 = vsel %vm1899, %v1990, %v1791
      %v2023 = vsel %vm1899, %v1991, %v1793
      %v2024 = vsel %vm1899, %v1992, %v1795
      %v2025 = vsel %vm1899, %v1993, %v1797
      %v2026 = vsel %vm1899, %v1994, %v1799
      %v2027 = vsel %vm1899, %v1995, %v1801
      %v2028 = vpack.c.bf16 %v1901, %v1900
      %v2029 = vpack.c.bf16 %v1997, %v1996
      %v2030 = vpack.c.bf16 %v1035, %v1034
      %v2031 = vpack.c.bf16 %v1903, %v1902
      %v2032 = vpack.c.bf16 %v1999, %v1998
      %v2033 = vpack.c.bf16 %v1037, %v1036
      %v2034 = vpack.c.bf16 %v1905, %v1904
      %v2035 = vpack.c.bf16 %v2001, %v2000
      %v2036 = vpack.c.bf16 %v1039, %v1038
      %v2037 = vpack.c.bf16 %v1907, %v1906
      %v2038 = vpack.c.bf16 %v2003, %v2002
      %v2039 = vpack.c.bf16 %v1041, %v1040
      %v2040 = vpack.c.bf16 %v1909, %v1908
      %v2041 = vpack.c.bf16 %v2005, %v2004
      %v2042 = vpack.c.bf16 %v1043, %v1042
      %v2043 = vpack.c.bf16 %v1911, %v1910
      %v2044 = vpack.c.bf16 %v2007, %v2006
      %v2045 = vpack.c.bf16 %v1045, %v1044
      %v2046 = vpack.c.bf16 %v1913, %v1912
      %v2047 = vpack.c.bf16 %v2009, %v2008
      %v2048 = vpack.c.bf16 %v1047, %v1046
      %v2049 = vpack.c.bf16 %v1915, %v1914
      %v2050 = vpack.c.bf16 %v2011, %v2010
      %v2051 = vpack.c.bf16 %v1049, %v1048
      %v2052 = vpack.c.bf16 %v1917, %v1916
      %v2053 = vpack.c.bf16 %v2013, %v2012
      %v2054 = vpack.c.bf16 %v1051, %v1050
      %v2055 = vpack.c.bf16 %v1919, %v1918
      %v2056 = vpack.c.bf16 %v2015, %v2014
      %v2057 = vpack.c.bf16 %v1053, %v1052
      %v2058 = vpack.c.bf16 %v1921, %v1920
      %v2059 = vpack.c.bf16 %v2017, %v2016
      %v2060 = vpack.c.bf16 %v1055, %v1054
      %v2061 = vpack.c.bf16 %v1923, %v1922
      %v2062 = vpack.c.bf16 %v2019, %v2018
      %v2063 = vpack.c.bf16 %v1057, %v1056
      %v2064 = vpack.c.bf16 %v1925, %v1924
      %v2065 = vpack.c.bf16 %v2021, %v2020
      %v2066 = vpack.c.bf16 %v1059, %v1058
      %v2067 = vpack.c.bf16 %v1927, %v1926
      %v2068 = vpack.c.bf16 %v2023, %v2022
      %v2069 = vpack.c.bf16 %v1061, %v1060
      %v2070 = vpack.c.bf16 %v1929, %v1928
      %v2071 = vpack.c.bf16 %v2025, %v2024
      %v2072 = vpack.c.bf16 %v1063, %v1062
      %v2073 = vpack.c.bf16 %v1931, %v1930
      %v2074 = vpack.c.bf16 %v2027, %v2026
      %v2075 = vpack.c.bf16 %v1065, %v1064
      %v2076 = vld [vmem:[%s3] sm:$0xf]
      %v2077 = vld [vmem:[%s3 + $0x4] sm:$0xf]
      %v2078 = vld [vmem:[%s3 + $0x8] sm:$0xf]
      %v2079 = vld [vmem:[%s3 + $0xc] sm:$0xf]
      %v2080 = vld [vmem:[%s3 + $0x10] sm:$0xf]
      %v2081 = vld [vmem:[%s3 + $0x14] sm:$0xf]
      %v2082 = vld [vmem:[%s3 + $0x18] sm:$0xf]
      %v2083 = vld [vmem:[%s3 + $0x1c] sm:$0xf]
      %v2084 = vld [vmem:[%s3 + $0x20] sm:$0xf]
      %v2085 = vld [vmem:[%s3 + $0x24] sm:$0xf]
      %v2086 = vld [vmem:[%s3 + $0x28] sm:$0xf]
      %v2087 = vld [vmem:[%s3 + $0x2c] sm:$0xf]
      %v2088 = vld [vmem:[%s3 + $0x30] sm:$0xf]
      %v2089 = vld [vmem:[%s3 + $0x34] sm:$0xf]
      %v2090 = vld [vmem:[%s3 + $0x38] sm:$0xf]
      %v2091 = vld [vmem:[%s3 + $0x3c] sm:$0xf]
      %v2092 = vld [vmem:[%s3 + $0x40] sm:$0xf]
      %v2093 = vld [vmem:[%s3 + $0x44] sm:$0xf]
      %v2094 = vld [vmem:[%s3 + $0x48] sm:$0xf]
      %v2095 = vld [vmem:[%s3 + $0x4c] sm:$0xf]
      %v2096 = vld [vmem:[%s3 + $0x50] sm:$0xf]
      %v2097 = vld [vmem:[%s3 + $0x54] sm:$0xf]
      %v2098 = vld [vmem:[%s3 + $0x58] sm:$0xf]
      %v2099 = vld [vmem:[%s3 + $0x5c] sm:$0xf]
      %v2100 = vld [vmem:[%s3 + $0x60] sm:$0xf]
      %v2101 = vld [vmem:[%s3 + $0x64] sm:$0xf]
      %v2102 = vld [vmem:[%s3 + $0x68] sm:$0xf]
      %v2103 = vld [vmem:[%s3 + $0x6c] sm:$0xf]
      %v2104 = vld [vmem:[%s3 + $0x70] sm:$0xf]
      %v2105 = vld [vmem:[%s3 + $0x74] sm:$0xf]
      %v2106 = vld [vmem:[%s3 + $0x78] sm:$0xf]
      %v2107 = vld [vmem:[%s3 + $0x7c] sm:$0xf]
      %v2108 = vld [vmem:[%s3 + $0x80] sm:$0xf]
      %v2109 = vld [vmem:[%s3 + $0x84] sm:$0xf]
      %v2110 = vld [vmem:[%s3 + $0x88] sm:$0xf]
      %v2111 = vld [vmem:[%s3 + $0x8c] sm:$0xf]
      %v2112 = vld [vmem:[%s4] sm:$0x1]
      %v2114 = vlaneseq
      %v2115 = vshrl.u32 %v2114, 7
      %v2116 = vsub.s32 0, %v2115
      %v2117 = vrot.slane %v2112, %v2116
      %v2155 = vunpack.c.l.b16 %v2076
      %v2156 = vunpack.c.l.b16 %v2077
      %v2157 = vunpack.c.l.b16 %v2078
      %v2158 = vunpack.c.l.b16 %v2079
      %v2159 = vunpack.c.l.b16 %v2080
      %v2160 = vunpack.c.l.b16 %v2081
      %v2161 = vunpack.c.l.b16 %v2082
      %v2162 = vunpack.c.l.b16 %v2083
      %v2163 = vunpack.c.l.b16 %v2084
      %v2164 = vunpack.c.l.b16 %v2085
      %v2165 = vunpack.c.l.b16 %v2086
      %v2166 = vunpack.c.l.b16 %v2087
      %v2167 = vunpack.c.l.b16 %v2088
      %v2168 = vunpack.c.l.b16 %v2089
      %v2169 = vunpack.c.l.b16 %v2090
      %v2170 = vunpack.c.l.b16 %v2091
      %v2171 = vunpack.c.l.b16 %v2092
      %v2172 = vunpack.c.l.b16 %v2093
      %v2173 = vunpack.c.l.b16 %v2094
      %v2174 = vunpack.c.l.b16 %v2095
      %v2175 = vunpack.c.l.b16 %v2096
      %v2176 = vunpack.c.l.b16 %v2097
      %v2177 = vunpack.c.l.b16 %v2098
      %v2178 = vunpack.c.l.b16 %v2099
      %v2179 = vunpack.c.l.b16 %v2100
      %v2180 = vunpack.c.l.b16 %v2101
      %v2181 = vunpack.c.l.b16 %v2102
      %v2182 = vunpack.c.l.b16 %v2103
      %v2183 = vunpack.c.l.b16 %v2104
      %v2184 = vunpack.c.l.b16 %v2105
      %v2185 = vunpack.c.l.b16 %v2106
      %v2186 = vunpack.c.l.b16 %v2107
      %v2187 = vunpack.c.l.b16 %v2108
      %v2188 = vunpack.c.l.b16 %v2109
      %v2189 = vunpack.c.l.b16 %v2110
      %v2190 = vunpack.c.l.b16 %v2111
      %v2191 = vpack.c.b16 %v2156, %v2155
      %v2192 = vpack.c.b16 %v2158, %v2157
      %v2193 = vpack.c.b16 %v2160, %v2159
      %v2194 = vpack.c.b16 %v2162, %v2161
      %v2195 = vpack.c.b16 %v2164, %v2163
      %v2196 = vpack.c.b16 %v2166, %v2165
      %v2197 = vpack.c.b16 %v2168, %v2167
      %v2198 = vpack.c.b16 %v2170, %v2169
      %v2199 = vpack.c.b16 %v2172, %v2171
      %v2200 = vpack.c.b16 %v2174, %v2173
      %v2201 = vpack.c.b16 %v2176, %v2175
      %v2202 = vpack.c.b16 %v2178, %v2177
      %v2203 = vpack.c.b16 %v2180, %v2179
      %v2204 = vpack.c.b16 %v2182, %v2181
      %v2205 = vpack.c.b16 %v2184, %v2183
      %v2206 = vpack.c.b16 %v2186, %v2185
      %v2207 = vpack.c.b16 %v2188, %v2187
      %v2208 = vpack.c.b16 %v2190, %v2189
      %v2228 = vsel %vm688, %v2030, 0
      %v2231 = vsel %vm688, %v2033, 0
      %v2234 = vsel %vm688, %v2036, 0
      %v2237 = vsel %vm688, %v2039, 0
      %v2240 = vsel %vm688, %v2042, 0
      %v2243 = vsel %vm688, %v2045, 0
      %v2246 = vsel %vm688, %v2048, 0
      %v2249 = vsel %vm688, %v2051, 0
      %v2252 = vsel %vm688, %v2054, 0
      %v2255 = vsel %vm688, %v2057, 0
      %v2258 = vsel %vm688, %v2060, 0
      %v2261 = vsel %vm688, %v2063, 0
      %v2264 = vsel %vm688, %v2066, 0
      %v2267 = vsel %vm688, %v2069, 0
      %v2270 = vsel %vm688, %v2072, 0
      %v2273 = vsel %vm688, %v2075, 0
      %2275 = vmatprep.subr.bf16.mxu0 0
      %2276 = vmatpush1.bf16.msra.mxu0 %v2198
      %2277 = vmatprep.subr.bf16.mxu0 0
      %2278 = vmatpush1.bf16.msra.mxu0 %v2197
      %2279 = vmatprep.subr.bf16.mxu0 0
      %2280 = vmatpush1.bf16.msra.mxu0 %v2196
      %2281 = vmatprep.subr.bf16.mxu0 0
      %2282 = vmatpush1.bf16.msra.mxu0 %v2195
      %2283 = vmatprep.subr.bf16.mxu0 0
      %2284 = vmatpush1.bf16.msra.mxu0 %v2194
      %2285 = vmatprep.subr.bf16.mxu0 0
      %2286 = vmatpush1.bf16.msra.mxu0 %v2193
      %2287 = vmatprep.subr.bf16.mxu0 0
      %2288 = vmatpush1.bf16.msra.mxu0 %v2192
      %2289 = vmatprep.subr.bf16.mxu0 0
      %2290 = vmatpush1.bf16.msra.mxu0 %v2191
      %2291 = vmatprep.subr.bf16.mxu0 0
      %2292 = vmatpush2.bf16.msra.mxu0 %v2206
      %2293 = vmatprep.subr.bf16.mxu0 0
      %2294 = vmatpush2.bf16.msra.mxu0 %v2205
      %2295 = vmatprep.subr.bf16.mxu0 0
      %2296 = vmatpush2.bf16.msra.mxu0 %v2204
      %2297 = vmatprep.subr.bf16.mxu0 0
      %2298 = vmatpush2.bf16.msra.mxu0 %v2203
      %2299 = vmatprep.subr.bf16.mxu0 0
      %2300 = vmatpush2.bf16.msra.mxu0 %v2202
      %2301 = vmatprep.subr.bf16.mxu0 0
      %2302 = vmatpush2.bf16.msra.mxu0 %v2201
      %2303 = vmatprep.subr.bf16.mxu0 0
      %2304 = vmatpush2.bf16.msra.mxu0 %v2200
      %2305 = vmatprep.subr.bf16.mxu0 0
      %2306 = vmatpush2.bf16.msra.mxu0 %v2199
      %2307 = vmatprep.mubr.bf16.mxu0 %v2029
      %2308 = vmatmul.mubr.bf16.gmra.mxu0 %v2028
      %v2309 = vpop.f32.mrf.mxu0
      %v2310 = vadd.f32 %v2117, %v2309
      %v2311 = vpop.f32.mrf.mxu0
      %v2312 = vpop.f32.mrf.mxu0
      %v2313 = vadd.f32 %v2117, %v2312
      %v2314 = vpop.f32.mrf.mxu0
      %2315 = vmatprep.mubr.bf16.mxu0 %v2032
      %2316 = vmatmul.mubr.bf16.gmra.mxu0 %v2031
      %v2317 = vpop.f32.mrf.mxu0
      %v2318 = vadd.f32 %v2117, %v2317
      %v2319 = vpop.f32.mrf.mxu0
      %v2320 = vpop.f32.mrf.mxu0
      %v2321 = vadd.f32 %v2117, %v2320
      %v2322 = vpop.f32.mrf.mxu0
      %2323 = vmatprep.mubr.bf16.mxu0 %v2035
      %2324 = vmatmul.mubr.bf16.gmra.mxu0 %v2034
      %v2325 = vpop.f32.mrf.mxu0
      %v2326 = vadd.f32 %v2117, %v2325
      %v2327 = vpop.f32.mrf.mxu0
      %v2328 = vpop.f32.mrf.mxu0
      %v2329 = vadd.f32 %v2117, %v2328
      %v2330 = vpop.f32.mrf.mxu0
      %2331 = vmatprep.mubr.bf16.mxu0 %v2038
      %2332 = vmatmul.mubr.bf16.gmra.mxu0 %v2037
      %v2333 = vpop.f32.mrf.mxu0
      %v2334 = vadd.f32 %v2117, %v2333
      %v2335 = vpop.f32.mrf.mxu0
      %v2336 = vpop.f32.mrf.mxu0
      %v2337 = vadd.f32 %v2117, %v2336
      %v2338 = vpop.f32.mrf.mxu0
      %2339 = vmatprep.mubr.bf16.mxu0 %v2041
      %2340 = vmatmul.mubr.bf16.gmra.mxu0 %v2040
      %v2341 = vpop.f32.mrf.mxu0
      %v2342 = vadd.f32 %v2117, %v2341
      %v2343 = vpop.f32.mrf.mxu0
      %v2344 = vpop.f32.mrf.mxu0
      %v2345 = vadd.f32 %v2117, %v2344
      %v2346 = vpop.f32.mrf.mxu0
      %2347 = vmatprep.mubr.bf16.mxu0 %v2044
      %2348 = vmatmul.mubr.bf16.gmra.mxu0 %v2043
      %v2349 = vpop.f32.mrf.mxu0
      %v2350 = vadd.f32 %v2117, %v2349
      %v2351 = vpop.f32.mrf.mxu0
      %v2352 = vpop.f32.mrf.mxu0
      %v2353 = vadd.f32 %v2117, %v2352
      %v2354 = vpop.f32.mrf.mxu0
      %2355 = vmatprep.mubr.bf16.mxu0 %v2047
      %2356 = vmatmul.mubr.bf16.gmra.mxu0 %v2046
      %v2357 = vpop.f32.mrf.mxu0
      %v2358 = vadd.f32 %v2117, %v2357
      %v2359 = vpop.f32.mrf.mxu0
      %v2360 = vpop.f32.mrf.mxu0
      %v2361 = vadd.f32 %v2117, %v2360
      %v2362 = vpop.f32.mrf.mxu0
      %2363 = vmatprep.mubr.bf16.mxu0 %v2050
      %2364 = vmatmul.mubr.bf16.gmra.mxu0 %v2049
      %v2365 = vpop.f32.mrf.mxu0
      %v2366 = vadd.f32 %v2117, %v2365
      %v2367 = vpop.f32.mrf.mxu0
      %v2368 = vpop.f32.mrf.mxu0
      %v2369 = vadd.f32 %v2117, %v2368
      %v2370 = vpop.f32.mrf.mxu0
      %2371 = vmatprep.mubr.bf16.mxu0 %v2053
      %2372 = vmatmul.mubr.bf16.gmra.mxu0 %v2052
      %v2373 = vpop.f32.mrf.mxu0
      %v2374 = vadd.f32 %v2117, %v2373
      %v2375 = vpop.f32.mrf.mxu0
      %v2376 = vpop.f32.mrf.mxu0
      %v2377 = vadd.f32 %v2117, %v2376
      %v2378 = vpop.f32.mrf.mxu0
      %2379 = vmatprep.mubr.bf16.mxu0 %v2056
      %2380 = vmatmul.mubr.bf16.gmra.mxu0 %v2055
      %v2381 = vpop.f32.mrf.mxu0
      %v2382 = vadd.f32 %v2117, %v2381
      %v2383 = vpop.f32.mrf.mxu0
      %v2384 = vpop.f32.mrf.mxu0
      %v2385 = vadd.f32 %v2117, %v2384
      %v2386 = vpop.f32.mrf.mxu0
      %2387 = vmatprep.mubr.bf16.mxu0 %v2059
      %2388 = vmatmul.mubr.bf16.gmra.mxu0 %v2058
      %v2389 = vpop.f32.mrf.mxu0
      %v2390 = vadd.f32 %v2117, %v2389
      %v2391 = vpop.f32.mrf.mxu0
      %v2392 = vpop.f32.mrf.mxu0
      %v2393 = vadd.f32 %v2117, %v2392
      %v2394 = vpop.f32.mrf.mxu0
      %2395 = vmatprep.mubr.bf16.mxu0 %v2062
      %2396 = vmatmul.mubr.bf16.gmra.mxu0 %v2061
      %v2397 = vpop.f32.mrf.mxu0
      %v2398 = vadd.f32 %v2117, %v2397
      %v2399 = vpop.f32.mrf.mxu0
      %v2400 = vpop.f32.mrf.mxu0
      %v2401 = vadd.f32 %v2117, %v2400
      %v2402 = vpop.f32.mrf.mxu0
      %2403 = vmatprep.mubr.bf16.mxu0 %v2065
      %2404 = vmatmul.mubr.bf16.gmra.mxu0 %v2064
      %v2405 = vpop.f32.mrf.mxu0
      %v2406 = vadd.f32 %v2117, %v2405
      %v2407 = vpop.f32.mrf.mxu0
      %v2408 = vpop.f32.mrf.mxu0
      %v2409 = vadd.f32 %v2117, %v2408
      %v2410 = vpop.f32.mrf.mxu0
      %2411 = vmatprep.mubr.bf16.mxu0 %v2068
      %2412 = vmatmul.mubr.bf16.gmra.mxu0 %v2067
      %v2413 = vpop.f32.mrf.mxu0
      %v2414 = vadd.f32 %v2117, %v2413
      %v2415 = vpop.f32.mrf.mxu0
      %v2416 = vpop.f32.mrf.mxu0
      %v2417 = vadd.f32 %v2117, %v2416
      %v2418 = vpop.f32.mrf.mxu0
      %2419 = vmatprep.mubr.bf16.mxu0 %v2071
      %2420 = vmatmul.mubr.bf16.gmra.mxu0 %v2070
      %v2421 = vpop.f32.mrf.mxu0
      %v2422 = vadd.f32 %v2117, %v2421
      %v2423 = vpop.f32.mrf.mxu0
      %v2424 = vpop.f32.mrf.mxu0
      %v2425 = vadd.f32 %v2117, %v2424
      %v2426 = vpop.f32.mrf.mxu0
      %2427 = vmatprep.mubr.bf16.mxu0 %v2074
      %2428 = vmatmul.mubr.bf16.gmra.mxu0 %v2073
      %v2429 = vpop.f32.mrf.mxu0
      %v2430 = vadd.f32 %v2117, %v2429
      %v2431 = vpop.f32.mrf.mxu0
      %v2432 = vpop.f32.mrf.mxu0
      %v2433 = vadd.f32 %v2117, %v2432
      %v2434 = vpop.f32.mrf.mxu0
      %2435 = vdwg.mxu0
      %2436 = vmatprep.subr.bf16.mxu0 0
      %2437 = vmatpush1.bf16.msra.mxu0 0
      %2438 = vmatprep.subr.bf16.mxu0 0
      %2439 = vmatpush1.bf16.msra.mxu0 0
      %2440 = vmatprep.subr.bf16.mxu0 0
      %2441 = vmatpush1.bf16.msra.mxu0 0
      %2442 = vmatprep.subr.bf16.mxu0 0
      %2443 = vmatpush1.bf16.msra.mxu0 0
      %2444 = vmatprep.subr.bf16.mxu0 0
      %2445 = vmatpush1.bf16.msra.mxu0 0
      %2446 = vmatprep.subr.bf16.mxu0 0
      %2447 = vmatpush1.bf16.msra.mxu0 0
      %2448 = vmatprep.subr.bf16.mxu0 0
      %2449 = vmatpush1.bf16.msra.mxu0 %v2208
      %2450 = vmatprep.subr.bf16.mxu0 0
      %2451 = vmatpush1.bf16.msra.mxu0 %v2207
      %2452 = vmatprep.subr.bf16.mxu0 0
      %2453 = vmatpush2.bf16.msra.mxu0 0
      %2454 = vmatprep.subr.bf16.mxu0 0
      %2455 = vmatpush2.bf16.msra.mxu0 0
      %2456 = vmatprep.subr.bf16.mxu0 0
      %2457 = vmatpush2.bf16.msra.mxu0 0
      %2458 = vmatprep.subr.bf16.mxu0 0
      %2459 = vmatpush2.bf16.msra.mxu0 0
      %2460 = vmatprep.subr.bf16.mxu0 0
      %2461 = vmatpush2.bf16.msra.mxu0 0
      %2462 = vmatprep.subr.bf16.mxu0 0
      %2463 = vmatpush2.bf16.msra.mxu0 0
      %2464 = vmatprep.subr.bf16.mxu0 0
      %2465 = vmatpush2.bf16.msra.mxu0 0
      %2466 = vmatprep.subr.bf16.mxu0 0
      %2467 = vmatpush2.bf16.msra.mxu0 0
      %2468 = vmatprep.mubr.bf16.mxu0 0
      %2469 = vmatmul.mubr.bf16.gmra.mxu0 %v2228
      %v2470 = vpop.f32.mrf.mxu0
      %v2471 = vadd.f32 %v2310, %v2470
      %v2472 = vpop.f32.mrf.mxu0
      %v2473 = vpop.f32.mrf.mxu0
      %v2474 = vadd.f32 %v2313, %v2473
      %v2475 = vpop.f32.mrf.mxu0
      %2476 = vmatprep.mubr.bf16.mxu0 0
      %2477 = vmatmul.mubr.bf16.gmra.mxu0 %v2231
      %v2478 = vpop.f32.mrf.mxu0
      %v2479 = vadd.f32 %v2318, %v2478
      %v2480 = vpop.f32.mrf.mxu0
      %v2481 = vpop.f32.mrf.mxu0
      %v2482 = vadd.f32 %v2321, %v2481
      %v2483 = vpop.f32.mrf.mxu0
      %2484 = vmatprep.mubr.bf16.mxu0 0
      %2485 = vmatmul.mubr.bf16.gmra.mxu0 %v2234
      %v2486 = vpop.f32.mrf.mxu0
      %v2487 = vadd.f32 %v2326, %v2486
      %v2488 = vpop.f32.mrf.mxu0
      %v2489 = vpop.f32.mrf.mxu0
      %v2490 = vadd.f32 %v2329, %v2489
      %v2491 = vpop.f32.mrf.mxu0
      %2492 = vmatprep.mubr.bf16.mxu0 0
      %2493 = vmatmul.mubr.bf16.gmra.mxu0 %v2237
      %v2494 = vpop.f32.mrf.mxu0
      %v2495 = vadd.f32 %v2334, %v2494
      %v2496 = vpop.f32.mrf.mxu0
      %v2497 = vpop.f32.mrf.mxu0
      %v2498 = vadd.f32 %v2337, %v2497
      %v2499 = vpop.f32.mrf.mxu0
      %2500 = vmatprep.mubr.bf16.mxu0 0
      %2501 = vmatmul.mubr.bf16.gmra.mxu0 %v2240
      %v2502 = vpop.f32.mrf.mxu0
      %v2503 = vadd.f32 %v2342, %v2502
      %v2504 = vpop.f32.mrf.mxu0
      %v2505 = vpop.f32.mrf.mxu0
      %v2506 = vadd.f32 %v2345, %v2505
      %v2507 = vpop.f32.mrf.mxu0
      %2508 = vmatprep.mubr.bf16.mxu0 0
      %2509 = vmatmul.mubr.bf16.gmra.mxu0 %v2243
      %v2510 = vpop.f32.mrf.mxu0
      %v2511 = vadd.f32 %v2350, %v2510
      %v2512 = vpop.f32.mrf.mxu0
      %v2513 = vpop.f32.mrf.mxu0
      %v2514 = vadd.f32 %v2353, %v2513
      %v2515 = vpop.f32.mrf.mxu0
      %2516 = vmatprep.mubr.bf16.mxu0 0
      %2517 = vmatmul.mubr.bf16.gmra.mxu0 %v2246
      %v2518 = vpop.f32.mrf.mxu0
      %v2519 = vadd.f32 %v2358, %v2518
      %v2520 = vpop.f32.mrf.mxu0
      %v2521 = vpop.f32.mrf.mxu0
      %v2522 = vadd.f32 %v2361, %v2521
      %v2523 = vpop.f32.mrf.mxu0
      %2524 = vmatprep.mubr.bf16.mxu0 0
      %2525 = vmatmul.mubr.bf16.gmra.mxu0 %v2249
      %v2526 = vpop.f32.mrf.mxu0
      %v2527 = vadd.f32 %v2366, %v2526
      %v2528 = vpop.f32.mrf.mxu0
      %v2529 = vpop.f32.mrf.mxu0
      %v2530 = vadd.f32 %v2369, %v2529
      %v2531 = vpop.f32.mrf.mxu0
      %2532 = vmatprep.mubr.bf16.mxu0 0
      %2533 = vmatmul.mubr.bf16.gmra.mxu0 %v2252
      %v2534 = vpop.f32.mrf.mxu0
      %v2535 = vadd.f32 %v2374, %v2534
      %v2536 = vpop.f32.mrf.mxu0
      %v2537 = vpop.f32.mrf.mxu0
      %v2538 = vadd.f32 %v2377, %v2537
      %v2539 = vpop.f32.mrf.mxu0
      %2540 = vmatprep.mubr.bf16.mxu0 0
      %2541 = vmatmul.mubr.bf16.gmra.mxu0 %v2255
      %v2542 = vpop.f32.mrf.mxu0
      %v2543 = vadd.f32 %v2382, %v2542
      %v2544 = vpop.f32.mrf.mxu0
      %v2545 = vpop.f32.mrf.mxu0
      %v2546 = vadd.f32 %v2385, %v2545
      %v2547 = vpop.f32.mrf.mxu0
      %2548 = vmatprep.mubr.bf16.mxu0 0
      %2549 = vmatmul.mubr.bf16.gmra.mxu0 %v2258
      %v2550 = vpop.f32.mrf.mxu0
      %v2551 = vadd.f32 %v2390, %v2550
      %v2552 = vpop.f32.mrf.mxu0
      %v2553 = vpop.f32.mrf.mxu0
      %v2554 = vadd.f32 %v2393, %v2553
      %v2555 = vpop.f32.mrf.mxu0
      %2556 = vmatprep.mubr.bf16.mxu0 0
      %2557 = vmatmul.mubr.bf16.gmra.mxu0 %v2261
      %v2558 = vpop.f32.mrf.mxu0
      %v2559 = vadd.f32 %v2398, %v2558
      %v2560 = vpop.f32.mrf.mxu0
      %v2561 = vpop.f32.mrf.mxu0
      %v2562 = vadd.f32 %v2401, %v2561
      %v2563 = vpop.f32.mrf.mxu0
      %2564 = vmatprep.mubr.bf16.mxu0 0
      %2565 = vmatmul.mubr.bf16.gmra.mxu0 %v2264
      %v2566 = vpop.f32.mrf.mxu0
      %v2567 = vadd.f32 %v2406, %v2566
      %v2568 = vpop.f32.mrf.mxu0
      %v2569 = vpop.f32.mrf.mxu0
      %v2570 = vadd.f32 %v2409, %v2569
      %v2571 = vpop.f32.mrf.mxu0
      %2572 = vmatprep.mubr.bf16.mxu0 0
      %2573 = vmatmul.mubr.bf16.gmra.mxu0 %v2267
      %v2574 = vpop.f32.mrf.mxu0
      %v2575 = vadd.f32 %v2414, %v2574
      %v2576 = vpop.f32.mrf.mxu0
      %v2577 = vpop.f32.mrf.mxu0
      %v2578 = vadd.f32 %v2417, %v2577
      %v2579 = vpop.f32.mrf.mxu0
      %2580 = vmatprep.mubr.bf16.mxu0 0
      %2581 = vmatmul.mubr.bf16.gmra.mxu0 %v2270
      %v2582 = vpop.f32.mrf.mxu0
      %v2583 = vadd.f32 %v2422, %v2582
      %v2584 = vpop.f32.mrf.mxu0
      %v2585 = vpop.f32.mrf.mxu0
      %v2586 = vadd.f32 %v2425, %v2585
      %v2587 = vpop.f32.mrf.mxu0
      %2588 = vmatprep.mubr.bf16.mxu0 0
      %2589 = vmatmul.mubr.bf16.gmra.mxu0 %v2273
      %v2590 = vpop.f32.mrf.mxu0
      %v2591 = vadd.f32 %v2430, %v2590
      %v2592 = vpop.f32.mrf.mxu0
      %v2593 = vpop.f32.mrf.mxu0
      %v2594 = vadd.f32 %v2433, %v2593
      %v2595 = vpop.f32.mrf.mxu0
      %2596 = vdwg.mxu0
      %v2597 = vmax.f32 %v2471, 0.0
      %v2598 = vmax.f32 %v2474, 0.0
      %v2599 = vmax.f32 %v2479, 0.0
      %v2600 = vmax.f32 %v2482, 0.0
      %v2601 = vmax.f32 %v2487, 0.0
      %v2602 = vmax.f32 %v2490, 0.0
      %v2603 = vmax.f32 %v2495, 0.0
      %v2604 = vmax.f32 %v2498, 0.0
      %v2605 = vmax.f32 %v2503, 0.0
      %v2606 = vmax.f32 %v2506, 0.0
      %v2607 = vmax.f32 %v2511, 0.0
      %v2608 = vmax.f32 %v2514, 0.0
      %v2609 = vmax.f32 %v2519, 0.0
      %v2610 = vmax.f32 %v2522, 0.0
      %v2611 = vmax.f32 %v2527, 0.0
      %v2612 = vmax.f32 %v2530, 0.0
      %v2613 = vmax.f32 %v2535, 0.0
      %v2614 = vmax.f32 %v2538, 0.0
      %v2615 = vmax.f32 %v2543, 0.0
      %v2616 = vmax.f32 %v2546, 0.0
      %v2617 = vmax.f32 %v2551, 0.0
      %v2618 = vmax.f32 %v2554, 0.0
      %v2619 = vmax.f32 %v2559, 0.0
      %v2620 = vmax.f32 %v2562, 0.0
      %v2621 = vmax.f32 %v2567, 0.0
      %v2622 = vmax.f32 %v2570, 0.0
      %v2623 = vmax.f32 %v2575, 0.0
      %v2624 = vmax.f32 %v2578, 0.0
      %v2625 = vmax.f32 %v2583, 0.0
      %v2626 = vmax.f32 %v2586, 0.0
      %v2627 = vmax.f32 %v2591, 0.0
      %v2628 = vmax.f32 %v2594, 0.0
      %v2629 = vmin.f32 %v2597, 20.0
      %v2630 = vmin.f32 %v2598, 20.0
      %v2631 = vmin.f32 %v2599, 20.0
      %v2632 = vmin.f32 %v2600, 20.0
      %v2633 = vmin.f32 %v2601, 20.0
      %v2634 = vmin.f32 %v2602, 20.0
      %v2635 = vmin.f32 %v2603, 20.0
      %v2636 = vmin.f32 %v2604, 20.0
      %v2637 = vmin.f32 %v2605, 20.0
      %v2638 = vmin.f32 %v2606, 20.0
      %v2639 = vmin.f32 %v2607, 20.0
      %v2640 = vmin.f32 %v2608, 20.0
      %v2641 = vmin.f32 %v2609, 20.0
      %v2642 = vmin.f32 %v2610, 20.0
      %v2643 = vmin.f32 %v2611, 20.0
      %v2644 = vmin.f32 %v2612, 20.0
      %v2645 = vmin.f32 %v2613, 20.0
      %v2646 = vmin.f32 %v2614, 20.0
      %v2647 = vmin.f32 %v2615, 20.0
      %v2648 = vmin.f32 %v2616, 20.0
      %v2649 = vmin.f32 %v2617, 20.0
      %v2650 = vmin.f32 %v2618, 20.0
      %v2651 = vmin.f32 %v2619, 20.0
      %v2652 = vmin.f32 %v2620, 20.0
      %v2653 = vmin.f32 %v2621, 20.0
      %v2654 = vmin.f32 %v2622, 20.0
      %v2655 = vmin.f32 %v2623, 20.0
      %v2656 = vmin.f32 %v2624, 20.0
      %v2657 = vmin.f32 %v2625, 20.0
      %v2658 = vmin.f32 %v2626, 20.0
      %v2659 = vmin.f32 %v2627, 20.0
      %v2660 = vmin.f32 %v2628, 20.0
      %v2661 = vpack.c.bf16 %v2630, %v2629
      %v2662 = vpack.c.bf16 %v2632, %v2631
      %v2663 = vpack.c.bf16 %v2634, %v2633
      %v2664 = vpack.c.bf16 %v2636, %v2635
      %v2665 = vpack.c.bf16 %v2638, %v2637
      %v2666 = vpack.c.bf16 %v2640, %v2639
      %v2667 = vpack.c.bf16 %v2642, %v2641
      %v2668 = vpack.c.bf16 %v2644, %v2643
      %v2669 = vpack.c.bf16 %v2646, %v2645
      %v2670 = vpack.c.bf16 %v2648, %v2647
      %v2671 = vpack.c.bf16 %v2650, %v2649
      %v2672 = vpack.c.bf16 %v2652, %v2651
      %v2673 = vpack.c.bf16 %v2654, %v2653
      %v2674 = vpack.c.bf16 %v2656, %v2655
      %v2675 = vpack.c.bf16 %v2658, %v2657
      %v2676 = vpack.c.bf16 %v2660, %v2659
      %v2677 = vld [vmem:[%s5] sm:$0xf]
      %v2678 = vld [vmem:[%s5 + $0x4] sm:$0xf]
      %v2679 = vld [vmem:[%s5 + $0x8] sm:$0xf]
      %v2680 = vld [vmem:[%s5 + $0xc] sm:$0xf]
      %v2681 = vld [vmem:[%s6] sm:$0x1]
      %v2683 = vlaneseq
      %v2684 = vshrl.u32 %v2683, 7
      %v2685 = vsub.s32 0, %v2684
      %v2686 = vrot.slane %v2681, %v2685
      %v2692 = vunpack.c.l.b16 %v2677
      %v2693 = vunpack.c.l.b16 %v2678
      %v2694 = vunpack.c.l.b16 %v2679
      %v2695 = vunpack.c.l.b16 %v2680
      %v2696 = vpack.c.b16 %v2693, %v2692
      %v2697 = vpack.c.b16 %v2695, %v2694
      %v2701 = vsel %vm688, %v2661, 0
      %v2704 = vsel %vm688, %v2662, 0
      %v2707 = vsel %vm688, %v2663, 0
      %v2710 = vsel %vm688, %v2664, 0
      %v2713 = vsel %vm688, %v2665, 0
      %v2716 = vsel %vm688, %v2666, 0
      %v2719 = vsel %vm688, %v2667, 0
      %v2722 = vsel %vm688, %v2668, 0
      %v2725 = vsel %vm688, %v2669, 0
      %v2728 = vsel %vm688, %v2670, 0
      %v2731 = vsel %vm688, %v2671, 0
      %v2734 = vsel %vm688, %v2672, 0
      %v2737 = vsel %vm688, %v2673, 0
      %v2740 = vsel %vm688, %v2674, 0
      %v2743 = vsel %vm688, %v2675, 0
      %v2746 = vsel %vm688, %v2676, 0
      %2748 = vmatprep.subr.bf16.mxu0 0
      %2749 = vmatpush1.bf16.msra.mxu0 0
      %2750 = vmatprep.subr.bf16.mxu0 0
      %2751 = vmatpush1.bf16.msra.mxu0 0
      %2752 = vmatprep.subr.bf16.mxu0 0
      %2753 = vmatpush1.bf16.msra.mxu0 0
      %2754 = vmatprep.subr.bf16.mxu0 0
      %2755 = vmatpush1.bf16.msra.mxu0 0
      %2756 = vmatprep.subr.bf16.mxu0 0
      %2757 = vmatpush1.bf16.msra.mxu0 0
      %2758 = vmatprep.subr.bf16.mxu0 0
      %2759 = vmatpush1.bf16.msra.mxu0 0
      %2760 = vmatprep.subr.bf16.mxu0 0
      %2761 = vmatpush1.bf16.msra.mxu0 %v2697
      %2762 = vmatprep.subr.bf16.mxu0 0
      %2763 = vmatpush1.bf16.msra.mxu0 %v2696
      %2764 = vmatprep.subr.bf16.mxu0 0
      %2765 = vmatpush2.bf16.msra.mxu0 0
      %2766 = vmatprep.subr.bf16.mxu0 0
      %2767 = vmatpush2.bf16.msra.mxu0 0
      %2768 = vmatprep.subr.bf16.mxu0 0
      %2769 = vmatpush2.bf16.msra.mxu0 0
      %2770 = vmatprep.subr.bf16.mxu0 0
      %2771 = vmatpush2.bf16.msra.mxu0 0
      %2772 = vmatprep.subr.bf16.mxu0 0
      %2773 = vmatpush2.bf16.msra.mxu0 0
      %2774 = vmatprep.subr.bf16.mxu0 0
      %2775 = vmatpush2.bf16.msra.mxu0 0
      %2776 = vmatprep.subr.bf16.mxu0 0
      %2777 = vmatpush2.bf16.msra.mxu0 0
      %2778 = vmatprep.subr.bf16.mxu0 0
      %2779 = vmatpush2.bf16.msra.mxu0 0
      %2780 = vmatprep.mubr.bf16.mxu0 0
      %2781 = vmatmul.mubr.bf16.gmra.mxu0 %v2701
      %v2782 = vpop.f32.mrf.mxu0
      %v2783 = vadd.f32 %v2686, %v2782
      %v2784 = vpop.f32.mrf.mxu0
      %v2785 = vpop.f32.mrf.mxu0
      %v2786 = vadd.f32 %v2686, %v2785
      %v2787 = vpop.f32.mrf.mxu0
      %2788 = vmatprep.mubr.bf16.mxu0 0
      %2789 = vmatmul.mubr.bf16.gmra.mxu0 %v2704
      %v2790 = vpop.f32.mrf.mxu0
      %v2791 = vadd.f32 %v2686, %v2790
      %v2792 = vpop.f32.mrf.mxu0
      %v2793 = vpop.f32.mrf.mxu0
      %v2794 = vadd.f32 %v2686, %v2793
      %v2795 = vpop.f32.mrf.mxu0
      %2796 = vmatprep.mubr.bf16.mxu0 0
      %2797 = vmatmul.mubr.bf16.gmra.mxu0 %v2707
      %v2798 = vpop.f32.mrf.mxu0
      %v2799 = vadd.f32 %v2686, %v2798
      %v2800 = vpop.f32.mrf.mxu0
      %v2801 = vpop.f32.mrf.mxu0
      %v2802 = vadd.f32 %v2686, %v2801
      %v2803 = vpop.f32.mrf.mxu0
      %2804 = vmatprep.mubr.bf16.mxu0 0
      %2805 = vmatmul.mubr.bf16.gmra.mxu0 %v2710
      %v2806 = vpop.f32.mrf.mxu0
      %v2807 = vadd.f32 %v2686, %v2806
      %v2808 = vpop.f32.mrf.mxu0
      %v2809 = vpop.f32.mrf.mxu0
      %v2810 = vadd.f32 %v2686, %v2809
      %v2811 = vpop.f32.mrf.mxu0
      %2812 = vmatprep.mubr.bf16.mxu0 0
      %2813 = vmatmul.mubr.bf16.gmra.mxu0 %v2713
      %v2814 = vpop.f32.mrf.mxu0
      %v2815 = vadd.f32 %v2686, %v2814
      %v2816 = vpop.f32.mrf.mxu0
      %v2817 = vpop.f32.mrf.mxu0
      %v2818 = vadd.f32 %v2686, %v2817
      %v2819 = vpop.f32.mrf.mxu0
      %2820 = vmatprep.mubr.bf16.mxu0 0
      %2821 = vmatmul.mubr.bf16.gmra.mxu0 %v2716
      %v2822 = vpop.f32.mrf.mxu0
      %v2823 = vadd.f32 %v2686, %v2822
      %v2824 = vpop.f32.mrf.mxu0
      %v2825 = vpop.f32.mrf.mxu0
      %v2826 = vadd.f32 %v2686, %v2825
      %v2827 = vpop.f32.mrf.mxu0
      %2828 = vmatprep.mubr.bf16.mxu0 0
      %2829 = vmatmul.mubr.bf16.gmra.mxu0 %v2719
      %v2830 = vpop.f32.mrf.mxu0
      %v2831 = vadd.f32 %v2686, %v2830
      %v2832 = vpop.f32.mrf.mxu0
      %v2833 = vpop.f32.mrf.mxu0
      %v2834 = vadd.f32 %v2686, %v2833
      %v2835 = vpop.f32.mrf.mxu0
      %2836 = vmatprep.mubr.bf16.mxu0 0
      %2837 = vmatmul.mubr.bf16.gmra.mxu0 %v2722
      %v2838 = vpop.f32.mrf.mxu0
      %v2839 = vadd.f32 %v2686, %v2838
      %v2840 = vpop.f32.mrf.mxu0
      %v2841 = vpop.f32.mrf.mxu0
      %v2842 = vadd.f32 %v2686, %v2841
      %v2843 = vpop.f32.mrf.mxu0
      %2844 = vmatprep.mubr.bf16.mxu0 0
      %2845 = vmatmul.mubr.bf16.gmra.mxu0 %v2725
      %v2846 = vpop.f32.mrf.mxu0
      %v2847 = vadd.f32 %v2686, %v2846
      %v2848 = vpop.f32.mrf.mxu0
      %v2849 = vpop.f32.mrf.mxu0
      %v2850 = vadd.f32 %v2686, %v2849
      %v2851 = vpop.f32.mrf.mxu0
      %2852 = vmatprep.mubr.bf16.mxu0 0
      %2853 = vmatmul.mubr.bf16.gmra.mxu0 %v2728
      %v2854 = vpop.f32.mrf.mxu0
      %v2855 = vadd.f32 %v2686, %v2854
      %v2856 = vpop.f32.mrf.mxu0
      %v2857 = vpop.f32.mrf.mxu0
      %v2858 = vadd.f32 %v2686, %v2857
      %v2859 = vpop.f32.mrf.mxu0
      %2860 = vmatprep.mubr.bf16.mxu0 0
      %2861 = vmatmul.mubr.bf16.gmra.mxu0 %v2731
      %v2862 = vpop.f32.mrf.mxu0
      %v2863 = vadd.f32 %v2686, %v2862
      %v2864 = vpop.f32.mrf.mxu0
      %v2865 = vpop.f32.mrf.mxu0
      %v2866 = vadd.f32 %v2686, %v2865
      %v2867 = vpop.f32.mrf.mxu0
      %2868 = vmatprep.mubr.bf16.mxu0 0
      %2869 = vmatmul.mubr.bf16.gmra.mxu0 %v2734
      %v2870 = vpop.f32.mrf.mxu0
      %v2871 = vadd.f32 %v2686, %v2870
      %v2872 = vpop.f32.mrf.mxu0
      %v2873 = vpop.f32.mrf.mxu0
      %v2874 = vadd.f32 %v2686, %v2873
      %v2875 = vpop.f32.mrf.mxu0
      %2876 = vmatprep.mubr.bf16.mxu0 0
      %2877 = vmatmul.mubr.bf16.gmra.mxu0 %v2737
      %v2878 = vpop.f32.mrf.mxu0
      %v2879 = vadd.f32 %v2686, %v2878
      %v2880 = vpop.f32.mrf.mxu0
      %v2881 = vpop.f32.mrf.mxu0
      %v2882 = vadd.f32 %v2686, %v2881
      %v2883 = vpop.f32.mrf.mxu0
      %2884 = vmatprep.mubr.bf16.mxu0 0
      %2885 = vmatmul.mubr.bf16.gmra.mxu0 %v2740
      %v2886 = vpop.f32.mrf.mxu0
      %v2887 = vadd.f32 %v2686, %v2886
      %v2888 = vpop.f32.mrf.mxu0
      %v2889 = vpop.f32.mrf.mxu0
      %v2890 = vadd.f32 %v2686, %v2889
      %v2891 = vpop.f32.mrf.mxu0
      %2892 = vmatprep.mubr.bf16.mxu0 0
      %2893 = vmatmul.mubr.bf16.gmra.mxu0 %v2743
      %v2894 = vpop.f32.mrf.mxu0
      %v2895 = vadd.f32 %v2686, %v2894
      %v2896 = vpop.f32.mrf.mxu0
      %v2897 = vpop.f32.mrf.mxu0
      %v2898 = vadd.f32 %v2686, %v2897
      %v2899 = vpop.f32.mrf.mxu0
      %2900 = vmatprep.mubr.bf16.mxu0 0
      %2901 = vmatmul.mubr.bf16.gmra.mxu0 %v2746
      %v2902 = vpop.f32.mrf.mxu0
      %v2903 = vadd.f32 %v2686, %v2902
      %v2904 = vpop.f32.mrf.mxu0
      %v2905 = vpop.f32.mrf.mxu0
      %v2906 = vadd.f32 %v2686, %v2905
      %v2907 = vpop.f32.mrf.mxu0
      %2908 = vdwg.mxu0
      %v2909 = vadd.f32 %v2783, %v328
      %v2910 = vadd.f32 %v2786, %v329
      %v2911 = vadd.f32 %v2791, %v330
      %v2912 = vadd.f32 %v2794, %v331
      %v2913 = vadd.f32 %v2799, %v332
      %v2914 = vadd.f32 %v2802, %v333
      %v2915 = vadd.f32 %v2807, %v334
      %v2916 = vadd.f32 %v2810, %v335
      %v2917 = vadd.f32 %v2815, %v336
      %v2918 = vadd.f32 %v2818, %v337
      %v2919 = vadd.f32 %v2823, %v338
      %v2920 = vadd.f32 %v2826, %v339
      %v2921 = vadd.f32 %v2831, %v340
      %v2922 = vadd.f32 %v2834, %v341
      %v2923 = vadd.f32 %v2839, %v342
      %v2924 = vadd.f32 %v2842, %v343
      %v2925 = vadd.f32 %v2847, %v360
      %v2926 = vadd.f32 %v2850, %v361
      %v2927 = vadd.f32 %v2855, %v362
      %v2928 = vadd.f32 %v2858, %v363
      %v2929 = vadd.f32 %v2863, %v364
      %v2930 = vadd.f32 %v2866, %v365
      %v2931 = vadd.f32 %v2871, %v366
      %v2932 = vadd.f32 %v2874, %v367
      %v2933 = vadd.f32 %v2879, %v368
      %v2934 = vadd.f32 %v2882, %v369
      %v2935 = vadd.f32 %v2887, %v370
      %v2936 = vadd.f32 %v2890, %v371
      %v2937 = vadd.f32 %v2895, %v372
      %v2938 = vadd.f32 %v2898, %v373
      %v2939 = vadd.f32 %v2903, %v374
      %v2940 = vadd.f32 %v2906, %v375
      %v2941 = vmax.f32 %v2909, 0.0
      %v2942 = vmax.f32 %v2910, 0.0
      %v2943 = vmax.f32 %v2911, 0.0
      %v2944 = vmax.f32 %v2912, 0.0
      %v2945 = vmax.f32 %v2913, 0.0
      %v2946 = vmax.f32 %v2914, 0.0
      %v2947 = vmax.f32 %v2915, 0.0
      %v2948 = vmax.f32 %v2916, 0.0
      %v2949 = vmax.f32 %v2917, 0.0
      %v2950 = vmax.f32 %v2918, 0.0
      %v2951 = vmax.f32 %v2919, 0.0
      %v2952 = vmax.f32 %v2920, 0.0
      %v2953 = vmax.f32 %v2921, 0.0
      %v2954 = vmax.f32 %v2922, 0.0
      %v2955 = vmax.f32 %v2923, 0.0
      %v2956 = vmax.f32 %v2924, 0.0
      %v2957 = vmax.f32 %v2925, 0.0
      %v2958 = vmax.f32 %v2926, 0.0
      %v2959 = vmax.f32 %v2927, 0.0
      %v2960 = vmax.f32 %v2928, 0.0
      %v2961 = vmax.f32 %v2929, 0.0
      %v2962 = vmax.f32 %v2930, 0.0
      %v2963 = vmax.f32 %v2931, 0.0
      %v2964 = vmax.f32 %v2932, 0.0
      %v2965 = vmax.f32 %v2933, 0.0
      %v2966 = vmax.f32 %v2934, 0.0
      %v2967 = vmax.f32 %v2935, 0.0
      %v2968 = vmax.f32 %v2936, 0.0
      %v2969 = vmax.f32 %v2937, 0.0
      %v2970 = vmax.f32 %v2938, 0.0
      %v2971 = vmax.f32 %v2939, 0.0
      %v2972 = vmax.f32 %v2940, 0.0
      %v2973 = vmin.f32 %v2941, 20.0
      %v2974 = vmin.f32 %v2942, 20.0
      %v2975 = vmin.f32 %v2943, 20.0
      %v2976 = vmin.f32 %v2944, 20.0
      %v2977 = vmin.f32 %v2945, 20.0
      %v2978 = vmin.f32 %v2946, 20.0
      %v2979 = vmin.f32 %v2947, 20.0
      %v2980 = vmin.f32 %v2948, 20.0
      %v2981 = vmin.f32 %v2949, 20.0
      %v2982 = vmin.f32 %v2950, 20.0
      %v2983 = vmin.f32 %v2951, 20.0
      %v2984 = vmin.f32 %v2952, 20.0
      %v2985 = vmin.f32 %v2953, 20.0
      %v2986 = vmin.f32 %v2954, 20.0
      %v2987 = vmin.f32 %v2955, 20.0
      %v2988 = vmin.f32 %v2956, 20.0
      %v2989 = vmin.f32 %v2957, 20.0
      %v2990 = vmin.f32 %v2958, 20.0
      %v2991 = vmin.f32 %v2959, 20.0
      %v2992 = vmin.f32 %v2960, 20.0
      %v2993 = vmin.f32 %v2961, 20.0
      %v2994 = vmin.f32 %v2962, 20.0
      %v2995 = vmin.f32 %v2963, 20.0
      %v2996 = vmin.f32 %v2964, 20.0
      %v2997 = vmin.f32 %v2965, 20.0
      %v2998 = vmin.f32 %v2966, 20.0
      %v2999 = vmin.f32 %v2967, 20.0
      %v3000 = vmin.f32 %v2968, 20.0
      %v3001 = vmin.f32 %v2969, 20.0
      %v3002 = vmin.f32 %v2970, 20.0
      %v3003 = vmin.f32 %v2971, 20.0
      %v3004 = vmin.f32 %v2972, 20.0
      %3005 = vxpose.xlu0.b32.start [1/16] %v2973, 128
      %3006 = vxpose.xlu0.b32.cont [2/16] %v2974, 128
      %3007 = vxpose.xlu0.b32.cont [3/16] %v2975, 128
      %3008 = vxpose.xlu0.b32.cont [4/16] %v2976, 128
      %3009 = vxpose.xlu0.b32.cont [5/16] %v2977, 128
      %3010 = vxpose.xlu0.b32.cont [6/16] %v2978, 128
      %3011 = vxpose.xlu0.b32.cont [7/16] %v2979, 128
      %3012 = vxpose.xlu0.b32.cont [8/16] %v2980, 128
      %3013 = vxpose.xlu0.b32.cont [9/16] %v2981, 128
      %3014 = vxpose.xlu0.b32.cont [10/16] %v2982, 128
      %3015 = vxpose.xlu0.b32.cont [11/16] %v2983, 128
      %3016 = vxpose.xlu0.b32.cont [12/16] %v2984, 128
      %3017 = vxpose.xlu0.b32.cont [13/16] %v2985, 128
      %3018 = vxpose.xlu0.b32.cont [14/16] %v2986, 128
      %3019 = vxpose.xlu0.b32.cont [15/16] %v2987, 128
      %3020 = vxpose.xlu0.b32.end [16/16] %v2988, 128
      %v3021 = vpop.trf.xlu0
      %v3022 = vpop.trf.xlu0
      %v3023 = vpop.trf.xlu0
      %v3024 = vpop.trf.xlu0
      %v3025 = vpop.trf.xlu0
      %v3026 = vpop.trf.xlu0
      %v3027 = vpop.trf.xlu0
      %v3028 = vpop.trf.xlu0
      %v3029 = vpop.trf.xlu0
      %v3030 = vpop.trf.xlu0
      %v3031 = vpop.trf.xlu0
      %v3032 = vpop.trf.xlu0
      %v3033 = vpop.trf.xlu0
      %v3034 = vpop.trf.xlu0
      %v3035 = vpop.trf.xlu0
      %v3036 = vpop.trf.xlu0
      %3037 = vxpose.xlu0.b32.start [1/16] %v2989, 128
      %3038 = vxpose.xlu0.b32.cont [2/16] %v2990, 128
      %3039 = vxpose.xlu0.b32.cont [3/16] %v2991, 128
      %3040 = vxpose.xlu0.b32.cont [4/16] %v2992, 128
      %3041 = vxpose.xlu0.b32.cont [5/16] %v2993, 128
      %3042 = vxpose.xlu0.b32.cont [6/16] %v2994, 128
      %3043 = vxpose.xlu0.b32.cont [7/16] %v2995, 128
      %3044 = vxpose.xlu0.b32.cont [8/16] %v2996, 128
      %3045 = vxpose.xlu0.b32.cont [9/16] %v2997, 128
      %3046 = vxpose.xlu0.b32.cont [10/16] %v2998, 128
      %3047 = vxpose.xlu0.b32.cont [11/16] %v2999, 128
      %3048 = vxpose.xlu0.b32.cont [12/16] %v3000, 128
      %3049 = vxpose.xlu0.b32.cont [13/16] %v3001, 128
      %3050 = vxpose.xlu0.b32.cont [14/16] %v3002, 128
      %3051 = vxpose.xlu0.b32.cont [15/16] %v3003, 128
      %3052 = vxpose.xlu0.b32.end [16/16] %v3004, 128
      %v3053 = vpop.trf.xlu0
      %v3054 = vpop.trf.xlu0
      %v3055 = vpop.trf.xlu0
      %v3056 = vpop.trf.xlu0
      %v3057 = vpop.trf.xlu0
      %v3058 = vpop.trf.xlu0
      %v3059 = vpop.trf.xlu0
      %v3060 = vpop.trf.xlu0
      %v3061 = vpop.trf.xlu0
      %v3062 = vpop.trf.xlu0
      %v3063 = vpop.trf.xlu0
      %v3064 = vpop.trf.xlu0
      %v3065 = vpop.trf.xlu0
      %v3066 = vpop.trf.xlu0
      %v3067 = vpop.trf.xlu0
      %v3068 = vpop.trf.xlu0
      %3069 = vst [vmem:[%s278] sm:$0xff] %v3021
      %3070 = vst [vmem:[%s278 + $0x8] sm:$0xff] %v3053
      %3071 = vst [vmem:[%s278 + $0x10] sm:$0xff] %v3022
      %3072 = vst [vmem:[%s278 + $0x18] sm:$0xff] %v3054
      %3073 = vst [vmem:[%s278 + $0x20] sm:$0xff] %v3023
      %3074 = vst [vmem:[%s278 + $0x28] sm:$0xff] %v3055
      %3075 = vst [vmem:[%s278 + $0x30] sm:$0xff] %v3024
      %3076 = vst [vmem:[%s278 + $0x38] sm:$0xff] %v3056
      %3077 = vst [vmem:[%s278 + $0x40] sm:$0xff] %v3025
      %3078 = vst [vmem:[%s278 + $0x48] sm:$0xff] %v3057
      %3079 = vst [vmem:[%s278 + $0x50] sm:$0xff] %v3026
      %3080 = vst [vmem:[%s278 + $0x58] sm:$0xff] %v3058
      %3081 = vst [vmem:[%s278 + $0x60] sm:$0xff] %v3027
      %3082 = vst [vmem:[%s278 + $0x68] sm:$0xff] %v3059
      %3083 = vst [vmem:[%s278 + $0x70] sm:$0xff] %v3028
      %3084 = vst [vmem:[%s278 + $0x78] sm:$0xff] %v3060
      %3085 = vst [vmem:[%s278 + $0x80] sm:$0xff] %v3029
      %3086 = vst [vmem:[%s278 + $0x88] sm:$0xff] %v3061
      %3087 = vst [vmem:[%s278 + $0x90] sm:$0xff] %v3030
      %3088 = vst [vmem:[%s278 + $0x98] sm:$0xff] %v3062
      %3089 = vst [vmem:[%s278 + $0xa0] sm:$0xff] %v3031
      %3090 = vst [vmem:[%s278 + $0xa8] sm:$0xff] %v3063
      %3091 = vst [vmem:[%s278 + $0xb0] sm:$0xff] %v3032
      %3092 = vst [vmem:[%s278 + $0xb8] sm:$0xff] %v3064
      %3093 = vst [vmem:[%s278 + $0xc0] sm:$0xff] %v3033
      %3094 = vst [vmem:[%s278 + $0xc8] sm:$0xff] %v3065
      %3095 = vst [vmem:[%s278 + $0xd0] sm:$0xff] %v3034
      %3096 = vst [vmem:[%s278 + $0xd8] sm:$0xff] %v3066
      %3097 = vst [vmem:[%s278 + $0xe0] sm:$0xff] %v3035
      %3098 = vst [vmem:[%s278 + $0xe8] sm:$0xff] %v3067
      %3099 = vst [vmem:[%s278 + $0xf0] sm:$0xff] %v3036
      %3100 = vst [vmem:[%s278 + $0xf8] sm:$0xff] %v3068
      %p3101 = scmp.lt.s32.totalorder %s18, 1
      %s3102 = scalar_select %p3101, %s18, 1
      %s3103 = smul.addr %s3102, 32
      %s3104 = smul.addr %s3103, 8
      %s3105 = scalar_lea.vmem %s7, %s3104
      // Predicated region
      $region49: #{basic_block50_forward.1} parent=47 // pred_check
        %p3106 = pneg %p188
      $region50: #{basic_block50_forward.1} parent=47 // pred_check_branch
        %3108 = sbr.rel (%p3106) target = $region52
      $region51: #{basic_block50_forward.1} parent=47 // pred_region
        _
      $region52: #{basic_block50_forward.1} parent=47 // pred_fallthru
        _
    $region48: #{basic_block50_forward.1} parent=5 // pred_fallthru
      _
    %p3109 = scmp.le.s32.totalorder 2, %s13
    // Predicated region
    $region53: #{basic_block50_forward.1} parent=5 // pred_check
      %p3110 = pneg %p3109
    $region54: #{basic_block50_forward.1} parent=5 // pred_check_branch
      %3112 = sbr.rel (%p3110) target = $region56
    $region55: #{basic_block50_forward.1} parent=5 // pred_region
      %s3113 = ssub.s32 %s13, 2
      // Predicated region
      $region57: #{basic_block50_forward.1} parent=55 // pred_check
        %p3114 = pneg %p194
      $region58: #{basic_block50_forward.1} parent=55 // pred_check_branch
        %3116 = sbr.rel (%p3114) target = $region60
      $region59: #{basic_block50_forward.1} parent=55 // pred_region
        %p3117 = scmp.lt.s32.totalorder %s19, 1
        %s3118 = scalar_select %p3117, %s19, 1
        %s3119 = smul.addr %s3118, 32
        %s3120 = smul.addr %s3119, 8
        %s3121 = scalar_lea.vmem %s7, %s3120
      $region60: #{basic_block50_forward.1} parent=55 // pred_fallthru
        _
    $region56: #{basic_block50_forward.1} parent=5 // pred_fallthru
      _
  $region6: #{basic_block50_forward.1} parent=0 // loop_footer
    %s17 = sadd.s32 1, %s13
  $region7: #{basic_block50_forward.1} parent=0 // loop_footer_branch
    %12 = sbr.rel target = $region3
  $region8: #{basic_block50_forward.1} parent=0 // loop_exit
    _

</llo_original>
